<compile_context>
chip_gen: v7x
topology: tpu7x:2x2x1
jax: 0.10.0
libtpu: 0.0.40
codegen_flags: <defaults>
</compile_context>

<pallas_src>
import jax
import jax.numpy as jnp
from jax.experimental import pallas as pl
from jax.experimental.pallas import tpu as pltpu

K = 5  # conv kernel size


# ------------------------------ fused kernel --------------------------------

def _lenet_kernel(x_ref, m1_ref, b1_ref, m2_ref, b2_ref,
                  g1_ref, bf1_ref, wf2_ref, bf2_ref, wf3_ref, bf3_ref,
                  out_ref, f1_ref, f2_ref, p2s_ref):
    """Whole LeNet forward for a block of B images (grid iterates over blocks).

    Activations live in VMEM in a channels-minor (H, W*C) layout.  Each conv is
    5 accumulated matmuls against banded weights whose N dim holds
    [even output cols | odd output cols] in two 128-lane tiles, so the
    W-direction 2x2 pool is an elementwise max of tile-aligned slices and the
    H-direction pool is a stride-2 sublane read of a VMEM scratch buffer.  The
    flattened features of every image in the block are staged into one scratch
    so the FC tail runs as three M=B matmuls for the whole block.
    """
    f32 = jnp.float32
    n_img = x_ref.shape[0]                    # images per grid step (static)

    for b in range(n_img):
        # ---- conv1 (3->6, 5x5) + bias + ReLU + 2x2 max-pool -----------------
        acc = jnp.zeros((28, 256), f32)
        for di in range(K):
            rows = x_ref[b, di:di + 28, :]                       # (28, 96)
            acc = acc + jnp.dot(rows, m1_ref[di],
                                preferred_element_type=f32)      # (28, 256)
        h1 = jnp.maximum(acc[:, :128], acc[:, 128:])             # W-pool
        f1_ref[...] = jnp.maximum(h1 + b1_ref[...], 0.0)         # bias + ReLU
        p1 = jnp.maximum(f1_ref[pl.ds(0, 14, stride=2), :],      # H-pool
                         f1_ref[pl.ds(1, 14, stride=2), :])      # (14, 128)

        # ---- conv2 (6->16, 5x5) + bias + ReLU + 2x2 max-pool ----------------
        acc2 = jnp.zeros((10, 256), f32)
        for di in range(K):
            acc2 = acc2 + jnp.dot(p1[di:di + 10, :], m2_ref[di],
                                  preferred_element_type=f32)    # (10, 256)
        h2 = jnp.maximum(acc2[:, :128], acc2[:, 128:])
        f2_ref[...] = jnp.maximum(h2 + b2_ref[...], 0.0)
        p2 = jnp.maximum(f2_ref[pl.ds(0, 5, stride=2), :],
                         f2_ref[pl.ds(1, 5, stride=2), :])       # (5, 128)

        # ---- stage flattened features for the block-batched FC tail ---------
        for h in range(K):
            p2s_ref[b:b + 1, 128 * h:128 * (h + 1)] = p2[h:h + 1, :]

    # ---- FC tail, batched over the whole block (M = n_img) ------------------
    a1 = jnp.maximum(jnp.dot(p2s_ref[...], g1_ref[...],
                             preferred_element_type=f32) + bf1_ref[...], 0.0)
    a2 = jnp.maximum(jnp.dot(a1, wf2_ref[...],
                             preferred_element_type=f32) + bf2_ref[...], 0.0)
    out_ref[0] = jnp.dot(a2, wf3_ref[...],
                         preferred_element_type=f32) + bf3_ref[...]


# --------------------------- init-time weight prep ---------------------------

def _conv_banded_mats(weight, w_in):
    """Fold im2col and the even/odd output-column split into banded matrices.

    weight: (Cout, Cin, k, k).  Returns (me, mo), each (k, w_in*Cin, (Wo//2)*Cout)
    such that, with the activation in channels-minor (H, W*Cin) layout,
        conv_out[oh, 2*owp + parity, co] =
            sum_di (act[oh+di, :] @ m[di])[owp*Cout + co].
    """
    cout, cin, k, _ = weight.shape
    wo = w_in - k + 1
    w_idx = jnp.arange(w_in)
    ow_idx = jnp.arange(wo)
    dj = w_idx[:, None] - ow_idx[None, :]                  # (w_in, wo): w - ow
    valid = (dj >= 0) & (dj < k)
    djc = jnp.clip(dj, 0, k - 1)
    wt = jnp.transpose(weight, (2, 1, 3, 0))               # (di, cin, dj, cout)
    g = wt[:, :, djc, :]                                   # (di, cin, w_in, wo, cout)
    g = jnp.where(valid[None, None, :, :, None], g, 0.0)
    m = jnp.transpose(g, (0, 2, 1, 3, 4)).reshape(k, w_in * cin, wo * cout)
    m4 = m.reshape(k, w_in * cin, wo, cout)
    me = m4[:, :, 0::2, :].reshape(k, w_in * cin, (wo // 2) * cout)
    mo = m4[:, :, 1::2, :].reshape(k, w_in * cin, (wo // 2) * cout)
    return me, mo


def _merged_conv_mat(weight, w_in, k_pad):
    """Merge even/odd banded matrices into one (k, k_pad, 256) matrix.

    Even output columns occupy lanes [0, n_half); odd output columns occupy
    lanes [128, 128+n_half); padding lanes / padding K-rows are zero.
    """
    me, mo = _conv_banded_mats(weight, w_in)
    k, kin, n_half = me.shape
    pad = lambda m: jnp.pad(m, ((0, 0), (0, k_pad - kin), (0, 128 - n_half)))
    return jnp.concatenate([pad(me), pad(mo)], axis=-1)     # (k, k_pad, 256)


def prepare_params(raw):
    """One-time repack of PyTorch-layout weights into MXU-friendly matrices."""
    m1 = _merged_conv_mat(raw["conv1_w"], 32, 96)            # (5, 96, 256)
    m2 = _merged_conv_mat(raw["conv2_w"], 14, 128)           # (5, 128, 256)
    b1 = jnp.concatenate([jnp.tile(raw["conv1_b"], 14),
                          jnp.zeros((44,), jnp.float32)]).reshape(1, 128)
    b2 = jnp.concatenate([jnp.tile(raw["conv2_b"], 5),
                          jnp.zeros((48,), jnp.float32)]).reshape(1, 128)
    # fc1 with the torch (C,H,W) flatten permutation folded in; rows are laid
    # out to match the (B, 640) staging buffer (h-major, 128-lane chunks).
    g1 = (raw["fc1_w"].reshape(120, 16, 5, 5)                # (out, c, h, w)
          .transpose(2, 3, 1, 0)                             # (h, w, c, out)
          .reshape(5, 80, 120))
    g1 = jnp.pad(g1, ((0, 0), (0, 48), (0, 0))).reshape(640, 120)
    return {
        "m1": m1, "b1": b1,
        "m2": m2, "b2": b2,
        "g1": g1, "bf1": raw["fc1_b"].reshape(1, 120),
        "wf2": raw["fc2_w"].T, "bf2": raw["fc2_b"].reshape(1, 84),
        "wf3": raw["fc3_w"].T, "bf3": raw["fc3_b"].reshape(1, 10),
    }


# ------------------------------- forward pass --------------------------------

def _full_spec(a):
    zeros = (0,) * a.ndim
    return pl.BlockSpec(a.shape, lambda g, _z=zeros: _z)


def net_forward(x, p, block_b=None):
    """x: (N, 3, 32, 32) float32 NCHW; p: prepared params (prepare_params)."""
    n = x.shape[0]
    assert x.shape[1:] == (3, 32, 32)
    if block_b is None:
        # Amortize per-step overhead while keeping the grid >= 2 steps when
        # n >= 2 (so v7x's two TensorCores both get work).
        block_b = min(8, max(1, n // 2))
    nblk = -(-n // block_b)
    n_pad = nblk * block_b

    # Channels-minor 2-D image layout (H, W*C); only per-call XLA glue.
    x2d = jnp.transpose(x, (0, 2, 3, 1)).reshape(n, 32, 32 * 3)
    if n_pad != n:
        x2d = jnp.concatenate(
            [x2d, jnp.zeros((n_pad - n, 32, 96), x2d.dtype)], axis=0)

    weights = (p["m1"], p["b1"], p["m2"], p["b2"],
               p["g1"], p["bf1"], p["wf2"], p["bf2"], p["wf3"], p["bf3"])

    flops = 2 * n_pad * (28 * 28 * 6 * 75 + 10 * 10 * 16 * 150
                         + 400 * 120 + 120 * 84 + 84 * 10)
    bytes_accessed = (x2d.size + sum(int(w.size) for w in weights)
                      + n_pad * 10) * 4

    out = pl.pallas_call(
        _lenet_kernel,
        out_shape=jax.ShapeDtypeStruct((nblk, block_b, 10), jnp.float32),
        grid_spec=pltpu.PrefetchScalarGridSpec(
            num_scalar_prefetch=0,
            grid=(nblk,),
            in_specs=[pl.BlockSpec((block_b, 32, 96), lambda g: (g, 0, 0))]
                     + [_full_spec(w) for w in weights],
            out_specs=pl.BlockSpec((1, block_b, 10), lambda g: (g, 0, 0)),
            scratch_shapes=[pltpu.VMEM((28, 128), jnp.float32),
                            pltpu.VMEM((10, 128), jnp.float32),
                            pltpu.VMEM((block_b, 640), jnp.float32)]),
        compiler_params=pltpu.CompilerParams(
            dimension_semantics=("parallel",)),
        cost_estimate=pl.CostEstimate(flops=flops, transcendentals=0,
                                      bytes_accessed=bytes_accessed),
    )(x2d, *weights)
    return out.reshape(n_pad, 10)[:n]


# ------------------------ reference (pure JAX, f32) ---------------------------

def _reference_forward(x, raw):
    def conv_relu(x, w, b):
        n, c, h, wid = x.shape
        cout, cin, k, _ = w.shape
        ho, wo = h - k + 1, wid - k + 1
        cols = [x[:, :, di:di + ho, dj:dj + wo]
                for di in range(k) for dj in range(k)]
        pch = jnp.stack(cols, axis=0).reshape(k, k, n, c, ho, wo)
        pch = pch.transpose(2, 4, 5, 3, 0, 1).reshape(n * ho * wo, c * k * k)
        y = pch @ w.reshape(cout, cin * k * k).T + b
        y = jnp.maximum(y, 0.0)
        return y.reshape(n, ho, wo, cout).transpose(0, 3, 1, 2)

    def pool(x):
        return jnp.maximum(
            jnp.maximum(x[:, :, 0::2, 0::2], x[:, :, 0::2, 1::2]),
            jnp.maximum(x[:, :, 1::2, 0::2], x[:, :, 1::2, 1::2]))

    x = pool(conv_relu(x, raw["conv1_w"], raw["conv1_b"]))
    x = pool(conv_relu(x, raw["conv2_w"], raw["conv2_b"]))
    x = x.reshape(x.shape[0], 16 * 5 * 5)
    x = jnp.maximum(x @ raw["fc1_w"].T + raw["fc1_b"], 0.0)
    x = jnp.maximum(x @ raw["fc2_w"].T + raw["fc2_b"], 0.0)
    return x @ raw["fc3_w"].T + raw["fc3_b"]


# ----------------------------- deterministic init ----------------------------

def init_params(key):
    ks = jax.random.split(key, 10)

    def u(k, shape, fan_in):
        bound = 1.0 / jnp.sqrt(jnp.float32(fan_in))
        return jax.random.uniform(k, shape, jnp.float32, -bound, bound)

    return {
        "conv1_w": u(ks[0], (6, 3, 5, 5), 3 * 5 * 5),
        "conv1_b": u(ks[1], (6,), 3 * 5 * 5),
        "conv2_w": u(ks[2], (16, 6, 5, 5), 6 * 5 * 5),
        "conv2_b": u(ks[3], (16,), 6 * 5 * 5),
        "fc1_w":   u(ks[4], (120, 400), 400),
        "fc1_b":   u(ks[5], (120,), 400),
        "fc2_w":   u(ks[6], (84, 120), 120),
        "fc2_b":   u(ks[7], (84,), 120),
        "fc3_w":   u(ks[8], (10, 84), 84),
        "fc3_b":   u(ks[9], (10,), 84),
    }


if __name__ == "__main__":
    key = jax.random.PRNGKey(0)
    pkey, xkey, xkey2 = jax.random.split(key, 3)
    raw = init_params(pkey)
    params = prepare_params(raw)        # one-time weight repacking (init-time)
    fwd = jax.jit(net_forward)

    # Net's flatten (16*5*5) implies a 3x32x32 input (CIFAR-10); batch = 2.
    x = jax.random.normal(xkey, (2, 3, 32, 32), jnp.float32)
    out = jax.block_until_ready(fwd(x, params))
    assert out.shape == (2, 10) and out.dtype == jnp.float32
    ref = _reference_forward(x, raw)
    # Tolerance leaves headroom for MXU f32 multi-pass rounding differences.
    assert jnp.allclose(out, ref, rtol=3e-2, atol=3e-2), \
        float(jnp.max(jnp.abs(out - ref)))

    # Also exercise the multi-image-per-grid-step path (B=5, 3 steps, padding).
    x2 = jax.random.normal(xkey2, (11, 3, 32, 32), jnp.float32)
    out2 = jax.block_until_ready(fwd(x2, params))
    assert out2.shape == (11, 10)
    ref2 = _reference_forward(x2, raw)
    assert jnp.allclose(out2, ref2, rtol=3e-2, atol=3e-2), \
        float(jnp.max(jnp.abs(out2 - ref2)))

    print("KERNEL_OK")
</pallas_src>

<mosaic_0001>
module attributes {stable_mosaic.version = 11 : i64} {
  func.func @_lenet_kernel(%arg0: i32, %arg1: memref<1x32x96xf32, #tpu.memory_space<vmem>>, %arg2: memref<5x96x256xf32, #tpu.memory_space<vmem>>, %arg3: memref<1x128xf32, #tpu.memory_space<vmem>>, %arg4: memref<5x128x256xf32, #tpu.memory_space<vmem>>, %arg5: memref<1x128xf32, #tpu.memory_space<vmem>>, %arg6: memref<640x120xf32, #tpu.memory_space<vmem>>, %arg7: memref<1x120xf32, #tpu.memory_space<vmem>>, %arg8: memref<120x84xf32, #tpu.memory_space<vmem>>, %arg9: memref<1x84xf32, #tpu.memory_space<vmem>>, %arg10: memref<84x10xf32, #tpu.memory_space<vmem>>, %arg11: memref<1x10xf32, #tpu.memory_space<vmem>>, %arg12: memref<1x1x10xf32, #tpu.memory_space<vmem>>, %arg13: memref<28x128xf32, #tpu.memory_space<vmem>>, %arg14: memref<10x128xf32, #tpu.memory_space<vmem>>, %arg15: memref<1x640xf32, #tpu.memory_space<vmem>>) attributes {dimension_semantics = [#tpu.dimension_semantics<parallel>], iteration_bounds = array<i64: 2>, scalar_prefetch = 0 : i64, scratch_operands = 3 : i64, tpu.core_type = #tpu.core_type<tc>, window_params = [{transform_indices = @transform_0, window_bounds = array<i64: 1, 32, 96>}, {pipeline_mode = #tpu.pipeline_mode<synchronous>, transform_indices = @transform_1, window_bounds = array<i64: 5, 96, 256>}, {pipeline_mode = #tpu.pipeline_mode<synchronous>, transform_indices = @transform_2, window_bounds = array<i64: 1, 128>}, {pipeline_mode = #tpu.pipeline_mode<synchronous>, transform_indices = @transform_3, window_bounds = array<i64: 5, 128, 256>}, {pipeline_mode = #tpu.pipeline_mode<synchronous>, transform_indices = @transform_4, window_bounds = array<i64: 1, 128>}, {pipeline_mode = #tpu.pipeline_mode<synchronous>, transform_indices = @transform_5, window_bounds = array<i64: 640, 120>}, {pipeline_mode = #tpu.pipeline_mode<synchronous>, transform_indices = @transform_6, window_bounds = array<i64: 1, 120>}, {pipeline_mode = #tpu.pipeline_mode<synchronous>, transform_indices = @transform_7, window_bounds = array<i64: 120, 84>}, {pipeline_mode = #tpu.pipeline_mode<synchronous>, transform_indices = @transform_8, window_bounds = array<i64: 1, 84>}, {pipeline_mode = #tpu.pipeline_mode<synchronous>, transform_indices = @transform_9, window_bounds = array<i64: 84, 10>}, {pipeline_mode = #tpu.pipeline_mode<synchronous>, transform_indices = @transform_10, window_bounds = array<i64: 1, 10>}, {transform_indices = @transform_11, window_bounds = array<i64: 1, 1, 10>}]} {
    %cst = arith.constant 0.000000e+00 : f32
    %0 = vector.broadcast %cst : f32 to vector<28x256xf32>
    %c0 = arith.constant 0 : index
    %c0_0 = arith.constant 0 : index
    %c0_1 = arith.constant 0 : index
    %1 = vector.load %arg1[%c0, %c0_0, %c0_1] : memref<1x32x96xf32, #tpu.memory_space<vmem>>, vector<1x28x96xf32>
    %2 = vector.shape_cast %1 : vector<1x28x96xf32> to vector<28x96xf32>
    %c0_2 = arith.constant 0 : index
    %c0_3 = arith.constant 0 : index
    %c0_4 = arith.constant 0 : index
    %3 = vector.load %arg2[%c0_2, %c0_3, %c0_4] : memref<5x96x256xf32, #tpu.memory_space<vmem>>, vector<1x96x256xf32>
    %4 = vector.shape_cast %3 : vector<1x96x256xf32> to vector<96x256xf32>
    %cst_5 = arith.constant dense<0.000000e+00> : vector<28x256xf32>
    %5 = tpu.matmul %2, %4, %cst_5 {dimension_numbers = #tpu.dot_dimension_numbers<[1], [0], [0], [1], [0, 0, 1, 1], [], []>} : vector<28x96xf32>, vector<96x256xf32>, vector<28x256xf32> -> vector<28x256xf32>
    %6 = arith.addf %0, %5 : vector<28x256xf32>
    %c0_6 = arith.constant 0 : index
    %c1 = arith.constant 1 : index
    %c0_7 = arith.constant 0 : index
    %7 = vector.load %arg1[%c0_6, %c1, %c0_7] : memref<1x32x96xf32, #tpu.memory_space<vmem>>, vector<1x28x96xf32>
    %8 = vector.shape_cast %7 : vector<1x28x96xf32> to vector<28x96xf32>
    %c1_8 = arith.constant 1 : index
    %c0_9 = arith.constant 0 : index
    %c0_10 = arith.constant 0 : index
    %9 = vector.load %arg2[%c1_8, %c0_9, %c0_10] : memref<5x96x256xf32, #tpu.memory_space<vmem>>, vector<1x96x256xf32>
    %10 = vector.shape_cast %9 : vector<1x96x256xf32> to vector<96x256xf32>
    %cst_11 = arith.constant dense<0.000000e+00> : vector<28x256xf32>
    %11 = tpu.matmul %8, %10, %cst_11 {dimension_numbers = #tpu.dot_dimension_numbers<[1], [0], [0], [1], [0, 0, 1, 1], [], []>} : vector<28x96xf32>, vector<96x256xf32>, vector<28x256xf32> -> vector<28x256xf32>
    %12 = arith.addf %6, %11 : vector<28x256xf32>
    %c0_12 = arith.constant 0 : index
    %c2 = arith.constant 2 : index
    %c0_13 = arith.constant 0 : index
    %13 = vector.load %arg1[%c0_12, %c2, %c0_13] : memref<1x32x96xf32, #tpu.memory_space<vmem>>, vector<1x28x96xf32>
    %14 = vector.shape_cast %13 : vector<1x28x96xf32> to vector<28x96xf32>
    %c2_14 = arith.constant 2 : index
    %c0_15 = arith.constant 0 : index
    %c0_16 = arith.constant 0 : index
    %15 = vector.load %arg2[%c2_14, %c0_15, %c0_16] : memref<5x96x256xf32, #tpu.memory_space<vmem>>, vector<1x96x256xf32>
    %16 = vector.shape_cast %15 : vector<1x96x256xf32> to vector<96x256xf32>
    %cst_17 = arith.constant dense<0.000000e+00> : vector<28x256xf32>
    %17 = tpu.matmul %14, %16, %cst_17 {dimension_numbers = #tpu.dot_dimension_numbers<[1], [0], [0], [1], [0, 0, 1, 1], [], []>} : vector<28x96xf32>, vector<96x256xf32>, vector<28x256xf32> -> vector<28x256xf32>
    %18 = arith.addf %12, %17 : vector<28x256xf32>
    %c0_18 = arith.constant 0 : index
    %c3 = arith.constant 3 : index
    %c0_19 = arith.constant 0 : index
    %19 = vector.load %arg1[%c0_18, %c3, %c0_19] : memref<1x32x96xf32, #tpu.memory_space<vmem>>, vector<1x28x96xf32>
    %20 = vector.shape_cast %19 : vector<1x28x96xf32> to vector<28x96xf32>
    %c3_20 = arith.constant 3 : index
    %c0_21 = arith.constant 0 : index
    %c0_22 = arith.constant 0 : index
    %21 = vector.load %arg2[%c3_20, %c0_21, %c0_22] : memref<5x96x256xf32, #tpu.memory_space<vmem>>, vector<1x96x256xf32>
    %22 = vector.shape_cast %21 : vector<1x96x256xf32> to vector<96x256xf32>
    %cst_23 = arith.constant dense<0.000000e+00> : vector<28x256xf32>
    %23 = tpu.matmul %20, %22, %cst_23 {dimension_numbers = #tpu.dot_dimension_numbers<[1], [0], [0], [1], [0, 0, 1, 1], [], []>} : vector<28x96xf32>, vector<96x256xf32>, vector<28x256xf32> -> vector<28x256xf32>
    %24 = arith.addf %18, %23 : vector<28x256xf32>
    %c0_24 = arith.constant 0 : index
    %c4 = arith.constant 4 : index
    %c0_25 = arith.constant 0 : index
    %25 = vector.load %arg1[%c0_24, %c4, %c0_25] : memref<1x32x96xf32, #tpu.memory_space<vmem>>, vector<1x28x96xf32>
    %26 = vector.shape_cast %25 : vector<1x28x96xf32> to vector<28x96xf32>
    %c4_26 = arith.constant 4 : index
    %c0_27 = arith.constant 0 : index
    %c0_28 = arith.constant 0 : index
    %27 = vector.load %arg2[%c4_26, %c0_27, %c0_28] : memref<5x96x256xf32, #tpu.memory_space<vmem>>, vector<1x96x256xf32>
    %28 = vector.shape_cast %27 : vector<1x96x256xf32> to vector<96x256xf32>
    %cst_29 = arith.constant dense<0.000000e+00> : vector<28x256xf32>
    %29 = tpu.matmul %26, %28, %cst_29 {dimension_numbers = #tpu.dot_dimension_numbers<[1], [0], [0], [1], [0, 0, 1, 1], [], []>} : vector<28x96xf32>, vector<96x256xf32>, vector<28x256xf32> -> vector<28x256xf32>
    %30 = arith.addf %24, %29 : vector<28x256xf32>
    %31 = vector.extract_strided_slice %30 {offsets = [0, 0], sizes = [28, 128], strides = [1, 1]} : vector<28x256xf32> to vector<28x128xf32>
    %32 = vector.extract_strided_slice %30 {offsets = [0, 128], sizes = [28, 128], strides = [1, 1]} : vector<28x256xf32> to vector<28x128xf32>
    %33 = arith.maximumf %31, %32 : vector<28x128xf32>
    %c0_30 = arith.constant 0 : index
    %c0_31 = arith.constant 0 : index
    %34 = vector.load %arg3[%c0_30, %c0_31] : memref<1x128xf32, #tpu.memory_space<vmem>>, vector<1x128xf32>
    %35 = vector.broadcast %34 : vector<1x128xf32> to vector<28x128xf32>
    %36 = arith.addf %33, %35 : vector<28x128xf32>
    %cst_32 = arith.constant 0.000000e+00 : f32
    %37 = vector.broadcast %cst_32 : f32 to vector<28x128xf32>
    %38 = arith.maximumf %36, %37 : vector<28x128xf32>
    %c0_33 = arith.constant 0 : index
    %c0_34 = arith.constant 0 : index
    %39 = vector.load %arg13[%c0_33, %c0_34] : memref<28x128xf32, #tpu.memory_space<vmem>>, vector<28x128xf32>
    tpu.vector_store %arg13[%c0_33, %c0_34], %38 {strides = array<i32>} : memref<28x128xf32, #tpu.memory_space<vmem>>, vector<28x128xf32>,
    %c0_35 = arith.constant 0 : index
    %c0_36 = arith.constant 0 : index
    %40 = tpu.strided_load %arg13[%c0_35, %c0_36] {strides = array<i32: 2, 1>} : memref<28x128xf32, #tpu.memory_space<vmem>>, vector<14x128xf32>
    %c1_37 = arith.constant 1 : index
    %c0_38 = arith.constant 0 : index
    %41 = tpu.strided_load %arg13[%c1_37, %c0_38] {strides = array<i32: 2, 1>} : memref<28x128xf32, #tpu.memory_space<vmem>>, vector<14x128xf32>
    %42 = arith.maximumf %40, %41 : vector<14x128xf32>
    %cst_39 = arith.constant 0.000000e+00 : f32
    %43 = vector.broadcast %cst_39 : f32 to vector<10x256xf32>
    %44 = vector.extract_strided_slice %42 {offsets = [0, 0], sizes = [10, 128], strides = [1, 1]} : vector<14x128xf32> to vector<10x128xf32>
    %c0_40 = arith.constant 0 : index
    %c0_41 = arith.constant 0 : index
    %c0_42 = arith.constant 0 : index
    %45 = vector.load %arg4[%c0_40, %c0_41, %c0_42] : memref<5x128x256xf32, #tpu.memory_space<vmem>>, vector<1x128x256xf32>
    %46 = vector.shape_cast %45 : vector<1x128x256xf32> to vector<128x256xf32>
    %cst_43 = arith.constant dense<0.000000e+00> : vector<10x256xf32>
    %47 = tpu.matmul %44, %46, %cst_43 {dimension_numbers = #tpu.dot_dimension_numbers<[1], [0], [0], [1], [0, 0, 1, 1], [], []>} : vector<10x128xf32>, vector<128x256xf32>, vector<10x256xf32> -> vector<10x256xf32>
    %48 = arith.addf %43, %47 : vector<10x256xf32>
    %49 = vector.extract_strided_slice %42 {offsets = [1, 0], sizes = [10, 128], strides = [1, 1]} : vector<14x128xf32> to vector<10x128xf32>
    %c1_44 = arith.constant 1 : index
    %c0_45 = arith.constant 0 : index
    %c0_46 = arith.constant 0 : index
    %50 = vector.load %arg4[%c1_44, %c0_45, %c0_46] : memref<5x128x256xf32, #tpu.memory_space<vmem>>, vector<1x128x256xf32>
    %51 = vector.shape_cast %50 : vector<1x128x256xf32> to vector<128x256xf32>
    %cst_47 = arith.constant dense<0.000000e+00> : vector<10x256xf32>
    %52 = tpu.matmul %49, %51, %cst_47 {dimension_numbers = #tpu.dot_dimension_numbers<[1], [0], [0], [1], [0, 0, 1, 1], [], []>} : vector<10x128xf32>, vector<128x256xf32>, vector<10x256xf32> -> vector<10x256xf32>
    %53 = arith.addf %48, %52 : vector<10x256xf32>
    %54 = vector.extract_strided_slice %42 {offsets = [2, 0], sizes = [10, 128], strides = [1, 1]} : vector<14x128xf32> to vector<10x128xf32>
    %c2_48 = arith.constant 2 : index
    %c0_49 = arith.constant 0 : index
    %c0_50 = arith.constant 0 : index
    %55 = vector.load %arg4[%c2_48, %c0_49, %c0_50] : memref<5x128x256xf32, #tpu.memory_space<vmem>>, vector<1x128x256xf32>
    %56 = vector.shape_cast %55 : vector<1x128x256xf32> to vector<128x256xf32>
    %cst_51 = arith.constant dense<0.000000e+00> : vector<10x256xf32>
    %57 = tpu.matmul %54, %56, %cst_51 {dimension_numbers = #tpu.dot_dimension_numbers<[1], [0], [0], [1], [0, 0, 1, 1], [], []>} : vector<10x128xf32>, vector<128x256xf32>, vector<10x256xf32> -> vector<10x256xf32>
    %58 = arith.addf %53, %57 : vector<10x256xf32>
    %59 = vector.extract_strided_slice %42 {offsets = [3, 0], sizes = [10, 128], strides = [1, 1]} : vector<14x128xf32> to vector<10x128xf32>
    %c3_52 = arith.constant 3 : index
    %c0_53 = arith.constant 0 : index
    %c0_54 = arith.constant 0 : index
    %60 = vector.load %arg4[%c3_52, %c0_53, %c0_54] : memref<5x128x256xf32, #tpu.memory_space<vmem>>, vector<1x128x256xf32>
    %61 = vector.shape_cast %60 : vector<1x128x256xf32> to vector<128x256xf32>
    %cst_55 = arith.constant dense<0.000000e+00> : vector<10x256xf32>
    %62 = tpu.matmul %59, %61, %cst_55 {dimension_numbers = #tpu.dot_dimension_numbers<[1], [0], [0], [1], [0, 0, 1, 1], [], []>} : vector<10x128xf32>, vector<128x256xf32>, vector<10x256xf32> -> vector<10x256xf32>
    %63 = arith.addf %58, %62 : vector<10x256xf32>
    %64 = vector.extract_strided_slice %42 {offsets = [4, 0], sizes = [10, 128], strides = [1, 1]} : vector<14x128xf32> to vector<10x128xf32>
    %c4_56 = arith.constant 4 : index
    %c0_57 = arith.constant 0 : index
    %c0_58 = arith.constant 0 : index
    %65 = vector.load %arg4[%c4_56, %c0_57, %c0_58] : memref<5x128x256xf32, #tpu.memory_space<vmem>>, vector<1x128x256xf32>
    %66 = vector.shape_cast %65 : vector<1x128x256xf32> to vector<128x256xf32>
    %cst_59 = arith.constant dense<0.000000e+00> : vector<10x256xf32>
    %67 = tpu.matmul %64, %66, %cst_59 {dimension_numbers = #tpu.dot_dimension_numbers<[1], [0], [0], [1], [0, 0, 1, 1], [], []>} : vector<10x128xf32>, vector<128x256xf32>, vector<10x256xf32> -> vector<10x256xf32>
    %68 = arith.addf %63, %67 : vector<10x256xf32>
    %69 = vector.extract_strided_slice %68 {offsets = [0, 0], sizes = [10, 128], strides = [1, 1]} : vector<10x256xf32> to vector<10x128xf32>
    %70 = vector.extract_strided_slice %68 {offsets = [0, 128], sizes = [10, 128], strides = [1, 1]} : vector<10x256xf32> to vector<10x128xf32>
    %71 = arith.maximumf %69, %70 : vector<10x128xf32>
    %c0_60 = arith.constant 0 : index
    %c0_61 = arith.constant 0 : index
    %72 = vector.load %arg5[%c0_60, %c0_61] : memref<1x128xf32, #tpu.memory_space<vmem>>, vector<1x128xf32>
    %73 = vector.broadcast %72 : vector<1x128xf32> to vector<10x128xf32>
    %74 = arith.addf %71, %73 : vector<10x128xf32>
    %cst_62 = arith.constant 0.000000e+00 : f32
    %75 = vector.broadcast %cst_62 : f32 to vector<10x128xf32>
    %76 = arith.maximumf %74, %75 : vector<10x128xf32>
    %c0_63 = arith.constant 0 : index
    %c0_64 = arith.constant 0 : index
    %77 = vector.load %arg14[%c0_63, %c0_64] : memref<10x128xf32, #tpu.memory_space<vmem>>, vector<10x128xf32>
    tpu.vector_store %arg14[%c0_63, %c0_64], %76 {strides = array<i32>} : memref<10x128xf32, #tpu.memory_space<vmem>>, vector<10x128xf32>,
    %c0_65 = arith.constant 0 : index
    %c0_66 = arith.constant 0 : index
    %78 = tpu.strided_load %arg14[%c0_65, %c0_66] {strides = array<i32: 2, 1>} : memref<10x128xf32, #tpu.memory_space<vmem>>, vector<5x128xf32>
    %c1_67 = arith.constant 1 : index
    %c0_68 = arith.constant 0 : index
    %79 = tpu.strided_load %arg14[%c1_67, %c0_68] {strides = array<i32: 2, 1>} : memref<10x128xf32, #tpu.memory_space<vmem>>, vector<5x128xf32>
    %80 = arith.maximumf %78, %79 : vector<5x128xf32>
    %81 = vector.extract_strided_slice %80 {offsets = [0, 0], sizes = [1, 128], strides = [1, 1]} : vector<5x128xf32> to vector<1x128xf32>
    %c0_69 = arith.constant 0 : index
    %c0_70 = arith.constant 0 : index
    %82 = vector.load %arg15[%c0_69, %c0_70] : memref<1x640xf32, #tpu.memory_space<vmem>>, vector<1x128xf32>
    tpu.vector_store %arg15[%c0_69, %c0_70], %81 {strides = array<i32>} : memref<1x640xf32, #tpu.memory_space<vmem>>, vector<1x128xf32>,
    %83 = vector.extract_strided_slice %80 {offsets = [1, 0], sizes = [1, 128], strides = [1, 1]} : vector<5x128xf32> to vector<1x128xf32>
    %c0_71 = arith.constant 0 : index
    %c128 = arith.constant 128 : index
    %84 = vector.load %arg15[%c0_71, %c128] : memref<1x640xf32, #tpu.memory_space<vmem>>, vector<1x128xf32>
    tpu.vector_store %arg15[%c0_71, %c128], %83 {strides = array<i32>} : memref<1x640xf32, #tpu.memory_space<vmem>>, vector<1x128xf32>,
    %85 = vector.extract_strided_slice %80 {offsets = [2, 0], sizes = [1, 128], strides = [1, 1]} : vector<5x128xf32> to vector<1x128xf32>
    %c0_72 = arith.constant 0 : index
    %c256 = arith.constant 256 : index
    %86 = vector.load %arg15[%c0_72, %c256] : memref<1x640xf32, #tpu.memory_space<vmem>>, vector<1x128xf32>
    tpu.vector_store %arg15[%c0_72, %c256], %85 {strides = array<i32>} : memref<1x640xf32, #tpu.memory_space<vmem>>, vector<1x128xf32>,
    %87 = vector.extract_strided_slice %80 {offsets = [3, 0], sizes = [1, 128], strides = [1, 1]} : vector<5x128xf32> to vector<1x128xf32>
    %c0_73 = arith.constant 0 : index
    %c384 = arith.constant 384 : index
    %88 = vector.load %arg15[%c0_73, %c384] : memref<1x640xf32, #tpu.memory_space<vmem>>, vector<1x128xf32>
    tpu.vector_store %arg15[%c0_73, %c384], %87 {strides = array<i32>} : memref<1x640xf32, #tpu.memory_space<vmem>>, vector<1x128xf32>,
    %89 = vector.extract_strided_slice %80 {offsets = [4, 0], sizes = [1, 128], strides = [1, 1]} : vector<5x128xf32> to vector<1x128xf32>
    %c0_74 = arith.constant 0 : index
    %c512 = arith.constant 512 : index
    %90 = vector.load %arg15[%c0_74, %c512] : memref<1x640xf32, #tpu.memory_space<vmem>>, vector<1x128xf32>
    tpu.vector_store %arg15[%c0_74, %c512], %89 {strides = array<i32>} : memref<1x640xf32, #tpu.memory_space<vmem>>, vector<1x128xf32>,
    %c0_75 = arith.constant 0 : index
    %c0_76 = arith.constant 0 : index
    %91 = vector.load %arg15[%c0_75, %c0_76] : memref<1x640xf32, #tpu.memory_space<vmem>>, vector<1x640xf32>
    %c0_77 = arith.constant 0 : index
    %c0_78 = arith.constant 0 : index
    %92 = vector.load %arg6[%c0_77, %c0_78] : memref<640x120xf32, #tpu.memory_space<vmem>>, vector<640x120xf32>
    %cst_79 = arith.constant dense<0.000000e+00> : vector<1x120xf32>
    %93 = tpu.matmul %91, %92, %cst_79 {dimension_numbers = #tpu.dot_dimension_numbers<[1], [0], [0], [1], [0, 0, 1, 1], [], []>} : vector<1x640xf32>, vector<640x120xf32>, vector<1x120xf32> -> vector<1x120xf32>
    %c0_80 = arith.constant 0 : index
    %c0_81 = arith.constant 0 : index
    %94 = vector.load %arg7[%c0_80, %c0_81] : memref<1x120xf32, #tpu.memory_space<vmem>>, vector<1x120xf32>
    %95 = arith.addf %93, %94 : vector<1x120xf32>
    %cst_82 = arith.constant 0.000000e+00 : f32
    %96 = vector.broadcast %cst_82 : f32 to vector<1x120xf32>
    %97 = arith.maximumf %95, %96 : vector<1x120xf32>
    %c0_83 = arith.constant 0 : index
    %c0_84 = arith.constant 0 : index
    %98 = vector.load %arg8[%c0_83, %c0_84] : memref<120x84xf32, #tpu.memory_space<vmem>>, vector<120x84xf32>
    %cst_85 = arith.constant dense<0.000000e+00> : vector<1x84xf32>
    %99 = tpu.matmul %97, %98, %cst_85 {dimension_numbers = #tpu.dot_dimension_numbers<[1], [0], [0], [1], [0, 0, 1, 1], [], []>} : vector<1x120xf32>, vector<120x84xf32>, vector<1x84xf32> -> vector<1x84xf32>
    %c0_86 = arith.constant 0 : index
    %c0_87 = arith.constant 0 : index
    %100 = vector.load %arg9[%c0_86, %c0_87] : memref<1x84xf32, #tpu.memory_space<vmem>>, vector<1x84xf32>
    %101 = arith.addf %99, %100 : vector<1x84xf32>
    %cst_88 = arith.constant 0.000000e+00 : f32
    %102 = vector.broadcast %cst_88 : f32 to vector<1x84xf32>
    %103 = arith.maximumf %101, %102 : vector<1x84xf32>
    %c0_89 = arith.constant 0 : index
    %c0_90 = arith.constant 0 : index
    %104 = vector.load %arg10[%c0_89, %c0_90] : memref<84x10xf32, #tpu.memory_space<vmem>>, vector<84x10xf32>
    %cst_91 = arith.constant dense<0.000000e+00> : vector<1x10xf32>
    %105 = tpu.matmul %103, %104, %cst_91 {dimension_numbers = #tpu.dot_dimension_numbers<[1], [0], [0], [1], [0, 0, 1, 1], [], []>} : vector<1x84xf32>, vector<84x10xf32>, vector<1x10xf32> -> vector<1x10xf32>
    %c0_92 = arith.constant 0 : index
    %c0_93 = arith.constant 0 : index
    %106 = vector.load %arg11[%c0_92, %c0_93] : memref<1x10xf32, #tpu.memory_space<vmem>>, vector<1x10xf32>
    %107 = arith.addf %105, %106 : vector<1x10xf32>
    %c0_94 = arith.constant 0 : index
    %c0_95 = arith.constant 0 : index
    %c0_96 = arith.constant 0 : index
    %108 = vector.load %arg12[%c0_94, %c0_95, %c0_96] : memref<1x1x10xf32, #tpu.memory_space<vmem>>, vector<1x1x10xf32>
    %109 = vector.shape_cast %108 : vector<1x1x10xf32> to vector<1x10xf32>
    %110 = vector.shape_cast %107 : vector<1x10xf32> to vector<1x1x10xf32>
    tpu.vector_store %arg12[%c0_94, %c0_95, %c0_96], %110 {strides = array<i32>} : memref<1x1x10xf32, #tpu.memory_space<vmem>>, vector<1x1x10xf32>,
    return
  }
  func.func @transform_0(%arg0: i32) -> (i32, i32, i32) {
    %c0_i32 = arith.constant 0 : i32
    %c0_i32_0 = arith.constant 0 : i32
    %c0_i32_1 = arith.constant 0 : i32
    return %arg0, %c0_i32, %c0_i32_0 : i32, i32, i32
  }
  func.func @transform_1(%arg0: i32) -> (i32, i32, i32) {
    %c0_i32 = arith.constant 0 : i32
    %c0_i32_0 = arith.constant 0 : i32
    %c0_i32_1 = arith.constant 0 : i32
    %c0_i32_2 = arith.constant 0 : i32
    return %c0_i32, %c0_i32_0, %c0_i32_1 : i32, i32, i32
  }
  func.func @transform_2(%arg0: i32) -> (i32, i32) {
    %c0_i32 = arith.constant 0 : i32
    %c0_i32_0 = arith.constant 0 : i32
    %c0_i32_1 = arith.constant 0 : i32
    return %c0_i32, %c0_i32_0 : i32, i32
  }
  func.func @transform_3(%arg0: i32) -> (i32, i32, i32) {
    %c0_i32 = arith.constant 0 : i32
    %c0_i32_0 = arith.constant 0 : i32
    %c0_i32_1 = arith.constant 0 : i32
    %c0_i32_2 = arith.constant 0 : i32
    return %c0_i32, %c0_i32_0, %c0_i32_1 : i32, i32, i32
  }
  func.func @transform_4(%arg0: i32) -> (i32, i32) {
    %c0_i32 = arith.constant 0 : i32
    %c0_i32_0 = arith.constant 0 : i32
    %c0_i32_1 = arith.constant 0 : i32
    return %c0_i32, %c0_i32_0 : i32, i32
  }
  func.func @transform_5(%arg0: i32) -> (i32, i32) {
    %c0_i32 = arith.constant 0 : i32
    %c0_i32_0 = arith.constant 0 : i32
    %c0_i32_1 = arith.constant 0 : i32
    return %c0_i32, %c0_i32_0 : i32, i32
  }
  func.func @transform_6(%arg0: i32) -> (i32, i32) {
    %c0_i32 = arith.constant 0 : i32
    %c0_i32_0 = arith.constant 0 : i32
    %c0_i32_1 = arith.constant 0 : i32
    return %c0_i32, %c0_i32_0 : i32, i32
  }
  func.func @transform_7(%arg0: i32) -> (i32, i32) {
    %c0_i32 = arith.constant 0 : i32
    %c0_i32_0 = arith.constant 0 : i32
    %c0_i32_1 = arith.constant 0 : i32
    return %c0_i32, %c0_i32_0 : i32, i32
  }
  func.func @transform_8(%arg0: i32) -> (i32, i32) {
    %c0_i32 = arith.constant 0 : i32
    %c0_i32_0 = arith.constant 0 : i32
    %c0_i32_1 = arith.constant 0 : i32
    return %c0_i32, %c0_i32_0 : i32, i32
  }
  func.func @transform_9(%arg0: i32) -> (i32, i32) {
    %c0_i32 = arith.constant 0 : i32
    %c0_i32_0 = arith.constant 0 : i32
    %c0_i32_1 = arith.constant 0 : i32
    return %c0_i32, %c0_i32_0 : i32, i32
  }
  func.func @transform_10(%arg0: i32) -> (i32, i32) {
    %c0_i32 = arith.constant 0 : i32
    %c0_i32_0 = arith.constant 0 : i32
    %c0_i32_1 = arith.constant 0 : i32
    return %c0_i32, %c0_i32_0 : i32, i32
  }
  func.func @transform_11(%arg0: i32) -> (i32, i32, i32) {
    %c0_i32 = arith.constant 0 : i32
    %c0_i32_0 = arith.constant 0 : i32
    %c0_i32_1 = arith.constant 0 : i32
    return %arg0, %c0_i32, %c0_i32_0 : i32, i32, i32
  }
}

</mosaic_0001>

<llo_original>
// kernel: net_forward.1
$region0: #{net_forward.1}
  #allocation0 [shape = 'u32[]', space=smem, size = 0x4, offset = 0x4, fixed_abs, tag = 'smem constant byte address 0x4 - core index']
  #allocation1 [shape = 'u32[144,128]{1,0:T(1,128)}', space=vmem, size = 0x12000, scoped, tag = 'internal scratch']
  #allocation2 [shape = 'f32[28,128]{1,0:T(8,128)}', space=vmem, size = 0x4000, scoped, tag = 'scratch operand']
  #allocation3 [shape = 'f32[10,128]{1,0:T(8,128)}', space=vmem, size = 0x2000, scoped, tag = 'scratch operand']
  #allocation4 [shape = 'f32[1,640]{1,0:T(1,128)}', space=vmem, size = 0xa00, scoped, tag = 'scratch operand']
  %s0 = inlined_call_operand.vmem [shape: f32[2,32,96], index: 0, kind: input, shape index: {}]
  %s1 = inlined_call_operand.hbm [shape: f32[5,96,256], index: 1, kind: input, shape index: {}]
  %s2 = inlined_call_operand.vmem [shape: f32[1,128], index: 2, kind: input, shape index: {}]
  %s3 = inlined_call_operand.vmem [shape: f32[5,128,256], index: 3, kind: input, shape index: {}]
  %s4 = inlined_call_operand.vmem [shape: f32[1,128], index: 4, kind: input, shape index: {}]
  %s5 = inlined_call_operand.vmem [shape: f32[640,120], index: 5, kind: input, shape index: {}]
  %s6 = inlined_call_operand.vmem [shape: f32[1,120], index: 6, kind: input, shape index: {}]
  %s7 = inlined_call_operand.vmem [shape: f32[120,84], index: 7, kind: input, shape index: {}]
  %s8 = inlined_call_operand.vmem [shape: f32[1,84], index: 8, kind: input, shape index: {}]
  %s9 = inlined_call_operand.vmem [shape: f32[84,10], index: 9, kind: input, shape index: {}]
  %s10 = inlined_call_operand.vmem [shape: f32[1,10], index: 10, kind: input, shape index: {}]
  %s11 = inlined_call_operand.hbm [shape: f32[2,1,10], index: 11, kind: output, shape index: {}]
  %s12 = sld [smem:[#allocation0]]
  $region81: #{net_forward.1} parent=0
    _
  %s14 = ssub.s32 1, %s12
  %s15 = scalar_select 0, %s14, %s12
  $region1: #{net_forward.1} parent=0
    #allocation5 [shape = 'u8[491520]{0}', space=vmem, size = 0x78000, scoped, tag = 'input window, operand 1, single buffered']
    #allocation6 [shape = 's32[2]{0}', space=sflag, size = 0x8, scoped, tag = 'scoped memory for net_forward.1']
    #allocation7 [shape = 's32[2]{0}', space=sflag, size = 0x8, scoped, tag = 'scoped memory for net_forward.1']
    #allocation8 [shape = 'u8[1024]{0}', space=vmem, size = 0x400, scoped, tag = 'output window, operand 0']
    %16 = vsyncpa [#allocation6], 0
    %17 = vsyncpa [#allocation7], 0
    %s18 = scalar_lea.sflag [#allocation7], 1
    %19 = vsyncpa %s18, 0
    loop: start=0, step=1, limit=4
    $region2: #{net_forward.1} parent=1 // loop_pre_header
      _
    $region3: #{net_forward.1} parent=1 // loop_header
      %s21 = sphi 0, %s25
      %p22 = scmp.ge.s32.totalorder %s21, 4
      %s31 = sphi 0, %s33
      %s34 = sphi 0, %s31
      %s35 = sphi 0, %s34
      %s51 = sphi 0, %s35
      %s55 = sphi 0, %s55
      %s57 = sphi 0, %s55
      %s58 = sphi 0, %s57
      %s72 = sphi 0, %s58
      %s76 = sphi 0, %s76
      %s78 = sphi 0, %s76
      %s79 = sphi 0, %s78
      %s93 = sphi 0, %s79
      %s97 = sphi 0, %s97
      %s99 = sphi 0, %s97
      %s100 = sphi 0, %s99
      %s114 = sphi 0, %s100
      %s118 = sphi 0, %s118
      %s120 = sphi 0, %s118
      %s121 = sphi 0, %s120
      %s135 = sphi 0, %s121
      %s139 = sphi 0, %s139
      %s141 = sphi 0, %s139
      %s142 = sphi 0, %s141
      %s156 = sphi 0, %s142
      %s160 = sphi 0, %s160
      %s162 = sphi 0, %s160
      %s163 = sphi 0, %s162
      %s177 = sphi 0, %s163
      %s181 = sphi 0, %s181
      %s183 = sphi 0, %s181
      %s184 = sphi 0, %s183
      %s198 = sphi 0, %s184
      %s202 = sphi 0, %s202
      %s204 = sphi 0, %s202
      %s205 = sphi 0, %s204
      %s219 = sphi 0, %s205
      %s223 = sphi 0, %s223
      %s225 = sphi 0, %s223
      %s226 = sphi 0, %s225
      %s240 = sphi 0, %s226
      %s244 = sphi 0, %s244
      %s246 = sphi 0, %s244
      %s247 = sphi 0, %s246
      %s261 = sphi 0, %s247
      %s267 = sphi 0, %s269
      %s270 = sphi 0, %s267
      %s271 = sphi 0, %s270
      %s287 = sphi 0, %s271
    $region4: #{net_forward.1} parent=1 // loop_header_branch
      %24 = sbr.rel (%p22) target = $region8
    $region5: #{net_forward.1} parent=1 // loop_body
      %s26 = ssub.s32 %s21, 1
      %s27 = ssub.s32 %s21, 2
      %s28 = sadd.s32 %s21, 1
      %s29 = ssub.s32 %s21, %s28
      %p30 = scmp.eq.s32.totalorder %s29, 0
      %s32 = sadd.s32 %s31, 1
      %s33 = scalar_select %p30, %s31, %s32
      %p36 = pneg %p30
      %p37 = scmp.eq.s32.totalorder %s21, 1
      %p38 = por %p36, %p37
      %p39 = scmp.ne.s32.totalorder %s31, %s34
      %p40 = scmp.eq.s32.totalorder %s21, 0
      %p41 = por %p39, %p40
      %p42 = scmp.ne.s32.totalorder %s31, %s34
      %p43 = scmp.eq.s32.totalorder %s26, 1
      %p44 = por %p42, %p43
      %p45 = scmp.ne.s32.totalorder %s34, %s35
      %p46 = scmp.eq.s32.totalorder %s26, 0
      %p47 = por %p45, %p46
      %p48 = scmp.ne.s32.totalorder %s34, %s35
      %p49 = scmp.eq.s32.totalorder %s27, 1
      %p50 = por %p48, %p49
      %p52 = scmp.ne.s32.totalorder %s35, %s51
      %p53 = scmp.eq.s32.totalorder %s27, 0
      %p54 = por %p52, %p53
      %s56 = sadd.s32 %s55, 1
      %p59 = scmp.eq.s32.totalorder %s21, 1
      %p60 = scmp.ne.s32.totalorder %s55, %s57
      %p61 = scmp.eq.s32.totalorder %s21, 0
      %p62 = por %p60, %p61
      %p63 = scmp.ne.s32.totalorder %s55, %s57
      %p64 = scmp.eq.s32.totalorder %s26, 1
      %p65 = por %p63, %p64
      %p66 = scmp.ne.s32.totalorder %s57, %s58
      %p67 = scmp.eq.s32.totalorder %s26, 0
      %p68 = por %p66, %p67
      %p69 = scmp.ne.s32.totalorder %s57, %s58
      %p70 = scmp.eq.s32.totalorder %s27, 1
      %p71 = por %p69, %p70
      %p73 = scmp.ne.s32.totalorder %s58, %s72
      %p74 = scmp.eq.s32.totalorder %s27, 0
      %p75 = por %p73, %p74
      %s77 = sadd.s32 %s76, 1
      %p80 = scmp.eq.s32.totalorder %s21, 1
      %p81 = scmp.ne.s32.totalorder %s76, %s78
      %p82 = scmp.eq.s32.totalorder %s21, 0
      %p83 = por %p81, %p82
      %p84 = scmp.ne.s32.totalorder %s76, %s78
      %p85 = scmp.eq.s32.totalorder %s26, 1
      %p86 = por %p84, %p85
      %p87 = scmp.ne.s32.totalorder %s78, %s79
      %p88 = scmp.eq.s32.totalorder %s26, 0
      %p89 = por %p87, %p88
      %p90 = scmp.ne.s32.totalorder %s78, %s79
      %p91 = scmp.eq.s32.totalorder %s27, 1
      %p92 = por %p90, %p91
      %p94 = scmp.ne.s32.totalorder %s79, %s93
      %p95 = scmp.eq.s32.totalorder %s27, 0
      %p96 = por %p94, %p95
      %s98 = sadd.s32 %s97, 1
      %p101 = scmp.eq.s32.totalorder %s21, 1
      %p102 = scmp.ne.s32.totalorder %s97, %s99
      %p103 = scmp.eq.s32.totalorder %s21, 0
      %p104 = por %p102, %p103
      %p105 = scmp.ne.s32.totalorder %s97, %s99
      %p106 = scmp.eq.s32.totalorder %s26, 1
      %p107 = por %p105, %p106
      %p108 = scmp.ne.s32.totalorder %s99, %s100
      %p109 = scmp.eq.s32.totalorder %s26, 0
      %p110 = por %p108, %p109
      %p111 = scmp.ne.s32.totalorder %s99, %s100
      %p112 = scmp.eq.s32.totalorder %s27, 1
      %p113 = por %p111, %p112
      %p115 = scmp.ne.s32.totalorder %s100, %s114
      %p116 = scmp.eq.s32.totalorder %s27, 0
      %p117 = por %p115, %p116
      %s119 = sadd.s32 %s118, 1
      %p122 = scmp.eq.s32.totalorder %s21, 1
      %p123 = scmp.ne.s32.totalorder %s118, %s120
      %p124 = scmp.eq.s32.totalorder %s21, 0
      %p125 = por %p123, %p124
      %p126 = scmp.ne.s32.totalorder %s118, %s120
      %p127 = scmp.eq.s32.totalorder %s26, 1
      %p128 = por %p126, %p127
      %p129 = scmp.ne.s32.totalorder %s120, %s121
      %p130 = scmp.eq.s32.totalorder %s26, 0
      %p131 = por %p129, %p130
      %p132 = scmp.ne.s32.totalorder %s120, %s121
      %p133 = scmp.eq.s32.totalorder %s27, 1
      %p134 = por %p132, %p133
      %p136 = scmp.ne.s32.totalorder %s121, %s135
      %p137 = scmp.eq.s32.totalorder %s27, 0
      %p138 = por %p136, %p137
      %s140 = sadd.s32 %s139, 1
      %p143 = scmp.eq.s32.totalorder %s21, 1
      %p144 = scmp.ne.s32.totalorder %s139, %s141
      %p145 = scmp.eq.s32.totalorder %s21, 0
      %p146 = por %p144, %p145
      %p147 = scmp.ne.s32.totalorder %s139, %s141
      %p148 = scmp.eq.s32.totalorder %s26, 1
      %p149 = por %p147, %p148
      %p150 = scmp.ne.s32.totalorder %s141, %s142
      %p151 = scmp.eq.s32.totalorder %s26, 0
      %p152 = por %p150, %p151
      %p153 = scmp.ne.s32.totalorder %s141, %s142
      %p154 = scmp.eq.s32.totalorder %s27, 1
      %p155 = por %p153, %p154
      %p157 = scmp.ne.s32.totalorder %s142, %s156
      %p158 = scmp.eq.s32.totalorder %s27, 0
      %p159 = por %p157, %p158
      %s161 = sadd.s32 %s160, 1
      %p164 = scmp.eq.s32.totalorder %s21, 1
      %p165 = scmp.ne.s32.totalorder %s160, %s162
      %p166 = scmp.eq.s32.totalorder %s21, 0
      %p167 = por %p165, %p166
      %p168 = scmp.ne.s32.totalorder %s160, %s162
      %p169 = scmp.eq.s32.totalorder %s26, 1
      %p170 = por %p168, %p169
      %p171 = scmp.ne.s32.totalorder %s162, %s163
      %p172 = scmp.eq.s32.totalorder %s26, 0
      %p173 = por %p171, %p172
      %p174 = scmp.ne.s32.totalorder %s162, %s163
      %p175 = scmp.eq.s32.totalorder %s27, 1
      %p176 = por %p174, %p175
      %p178 = scmp.ne.s32.totalorder %s163, %s177
      %p179 = scmp.eq.s32.totalorder %s27, 0
      %p180 = por %p178, %p179
      %s182 = sadd.s32 %s181, 1
      %p185 = scmp.eq.s32.totalorder %s21, 1
      %p186 = scmp.ne.s32.totalorder %s181, %s183
      %p187 = scmp.eq.s32.totalorder %s21, 0
      %p188 = por %p186, %p187
      %p189 = scmp.ne.s32.totalorder %s181, %s183
      %p190 = scmp.eq.s32.totalorder %s26, 1
      %p191 = por %p189, %p190
      %p192 = scmp.ne.s32.totalorder %s183, %s184
      %p193 = scmp.eq.s32.totalorder %s26, 0
      %p194 = por %p192, %p193
      %p195 = scmp.ne.s32.totalorder %s183, %s184
      %p196 = scmp.eq.s32.totalorder %s27, 1
      %p197 = por %p195, %p196
      %p199 = scmp.ne.s32.totalorder %s184, %s198
      %p200 = scmp.eq.s32.totalorder %s27, 0
      %p201 = por %p199, %p200
      %s203 = sadd.s32 %s202, 1
      %p206 = scmp.eq.s32.totalorder %s21, 1
      %p207 = scmp.ne.s32.totalorder %s202, %s204
      %p208 = scmp.eq.s32.totalorder %s21, 0
      %p209 = por %p207, %p208
      %p210 = scmp.ne.s32.totalorder %s202, %s204
      %p211 = scmp.eq.s32.totalorder %s26, 1
      %p212 = por %p210, %p211
      %p213 = scmp.ne.s32.totalorder %s204, %s205
      %p214 = scmp.eq.s32.totalorder %s26, 0
      %p215 = por %p213, %p214
      %p216 = scmp.ne.s32.totalorder %s204, %s205
      %p217 = scmp.eq.s32.totalorder %s27, 1
      %p218 = por %p216, %p217
      %p220 = scmp.ne.s32.totalorder %s205, %s219
      %p221 = scmp.eq.s32.totalorder %s27, 0
      %p222 = por %p220, %p221
      %s224 = sadd.s32 %s223, 1
      %p227 = scmp.eq.s32.totalorder %s21, 1
      %p228 = scmp.ne.s32.totalorder %s223, %s225
      %p229 = scmp.eq.s32.totalorder %s21, 0
      %p230 = por %p228, %p229
      %p231 = scmp.ne.s32.totalorder %s223, %s225
      %p232 = scmp.eq.s32.totalorder %s26, 1
      %p233 = por %p231, %p232
      %p234 = scmp.ne.s32.totalorder %s225, %s226
      %p235 = scmp.eq.s32.totalorder %s26, 0
      %p236 = por %p234, %p235
      %p237 = scmp.ne.s32.totalorder %s225, %s226
      %p238 = scmp.eq.s32.totalorder %s27, 1
      %p239 = por %p237, %p238
      %p241 = scmp.ne.s32.totalorder %s226, %s240
      %p242 = scmp.eq.s32.totalorder %s27, 0
      %p243 = por %p241, %p242
      %s245 = sadd.s32 %s244, 1
      %p248 = scmp.eq.s32.totalorder %s21, 1
      %p249 = scmp.ne.s32.totalorder %s244, %s246
      %p250 = scmp.eq.s32.totalorder %s21, 0
      %p251 = por %p249, %p250
      %p252 = scmp.ne.s32.totalorder %s244, %s246
      %p253 = scmp.eq.s32.totalorder %s26, 1
      %p254 = por %p252, %p253
      %p255 = scmp.ne.s32.totalorder %s246, %s247
      %p256 = scmp.eq.s32.totalorder %s26, 0
      %p257 = por %p255, %p256
      %p258 = scmp.ne.s32.totalorder %s246, %s247
      %p259 = scmp.eq.s32.totalorder %s27, 1
      %p260 = por %p258, %p259
      %p262 = scmp.ne.s32.totalorder %s247, %s261
      %p263 = scmp.eq.s32.totalorder %s27, 0
      %p264 = por %p262, %p263
      %s265 = ssub.s32 %s21, %s28
      %p266 = scmp.eq.s32.totalorder %s265, 0
      %s268 = sadd.s32 %s267, 1
      %s269 = scalar_select %p266, %s267, %s268
      %p272 = pneg %p266
      %p273 = scmp.eq.s32.totalorder %s21, 1
      %p274 = por %p272, %p273
      %p275 = scmp.ne.s32.totalorder %s267, %s270
      %p276 = scmp.eq.s32.totalorder %s21, 0
      %p277 = por %p275, %p276
      %p278 = scmp.ne.s32.totalorder %s267, %s270
      %p279 = scmp.eq.s32.totalorder %s26, 1
      %p280 = por %p278, %p279
      %p281 = scmp.ne.s32.totalorder %s270, %s271
      %p282 = scmp.eq.s32.totalorder %s26, 0
      %p283 = por %p281, %p282
      %p284 = scmp.ne.s32.totalorder %s270, %s271
      %p285 = scmp.eq.s32.totalorder %s27, 1
      %p286 = por %p284, %p285
      %p288 = scmp.ne.s32.totalorder %s271, %s287
      %p289 = scmp.eq.s32.totalorder %s27, 0
      %p290 = por %p288, %p289
      %p291 = scmp.le.s32.totalorder 1, %s21
      %p292 = scmp.lt.s32.totalorder %s21, 3
      %p293 = pnand %p291, %p292
      %p294 = pneg %p293
      // Predicated region
      $region9: #{net_forward.1} parent=5 // pred_check
        _
      $region10: #{net_forward.1} parent=5 // pred_check_branch
        %296 = sbr.rel (%p293) target = $region12
      $region11: #{net_forward.1} parent=5 // pred_region
        %s297 = ssub.s32 %s21, 1
        // Predicated region
        $region13: #{net_forward.1} parent=11 // pred_check
          %p298 = pneg %p68
        $region14: #{net_forward.1} parent=11 // pred_check_branch
          %300 = sbr.rel (%p298) target = $region16
        $region15: #{net_forward.1} parent=11 // pred_region
          %s302 = ssub.s32 15360, 15360
          %303 = vsyncadd [#allocation6], %s302
          %s304 = sshll.u32 [#allocation5], 4
          %s305 = int_to_ptr.vmem [resolvable:$true] %s304
          %310 = dma.hbm_to_vmem [thread:$0]  %s1, 15360, %s305, [#allocation6], 256, 256, 16
        $region16: #{net_forward.1} parent=11 // pred_fallthru
          _
        // Predicated region
        $region17: #{net_forward.1} parent=11 // pred_check
          %p311 = pneg %p89
        $region18: #{net_forward.1} parent=11 // pred_check_branch
          %313 = sbr.rel (%p311) target = $region20
        $region19: #{net_forward.1} parent=11 // pred_region
          _
        $region20: #{net_forward.1} parent=11 // pred_fallthru
          _
        // Predicated region
        $region21: #{net_forward.1} parent=11 // pred_check
          %p314 = pneg %p110
        $region22: #{net_forward.1} parent=11 // pred_check_branch
          %316 = sbr.rel (%p314) target = $region24
        $region23: #{net_forward.1} parent=11 // pred_region
          _
        $region24: #{net_forward.1} parent=11 // pred_fallthru
          _
        // Predicated region
        $region25: #{net_forward.1} parent=11 // pred_check
          %p317 = pneg %p131
        $region26: #{net_forward.1} parent=11 // pred_check_branch
          %319 = sbr.rel (%p317) target = $region28
        $region27: #{net_forward.1} parent=11 // pred_region
          _
        $region28: #{net_forward.1} parent=11 // pred_fallthru
          _
        // Predicated region
        $region29: #{net_forward.1} parent=11 // pred_check
          %p320 = pneg %p152
        $region30: #{net_forward.1} parent=11 // pred_check_branch
          %322 = sbr.rel (%p320) target = $region32
        $region31: #{net_forward.1} parent=11 // pred_region
          _
        $region32: #{net_forward.1} parent=11 // pred_fallthru
          _
        // Predicated region
        $region33: #{net_forward.1} parent=11 // pred_check
          %p323 = pneg %p173
        $region34: #{net_forward.1} parent=11 // pred_check_branch
          %325 = sbr.rel (%p323) target = $region36
        $region35: #{net_forward.1} parent=11 // pred_region
          _
        $region36: #{net_forward.1} parent=11 // pred_fallthru
          _
        // Predicated region
        $region37: #{net_forward.1} parent=11 // pred_check
          %p326 = pneg %p194
        $region38: #{net_forward.1} parent=11 // pred_check_branch
          %328 = sbr.rel (%p326) target = $region40
        $region39: #{net_forward.1} parent=11 // pred_region
          _
        $region40: #{net_forward.1} parent=11 // pred_fallthru
          _
        // Predicated region
        $region41: #{net_forward.1} parent=11 // pred_check
          %p329 = pneg %p215
        $region42: #{net_forward.1} parent=11 // pred_check_branch
          %331 = sbr.rel (%p329) target = $region44
        $region43: #{net_forward.1} parent=11 // pred_region
          _
        $region44: #{net_forward.1} parent=11 // pred_fallthru
          _
        // Predicated region
        $region45: #{net_forward.1} parent=11 // pred_check
          %p332 = pneg %p236
        $region46: #{net_forward.1} parent=11 // pred_check_branch
          %334 = sbr.rel (%p332) target = $region48
        $region47: #{net_forward.1} parent=11 // pred_region
          _
        $region48: #{net_forward.1} parent=11 // pred_fallthru
          _
        // Predicated region
        $region49: #{net_forward.1} parent=11 // pred_check
          %p335 = pneg %p257
        $region50: #{net_forward.1} parent=11 // pred_check_branch
          %337 = sbr.rel (%p335) target = $region52
        $region51: #{net_forward.1} parent=11 // pred_region
          _
        $region52: #{net_forward.1} parent=11 // pred_fallthru
          _
      $region12: #{net_forward.1} parent=5 // pred_fallthru
        _
      %p338 = scmp.lt.s32.totalorder %s21, 2
      // Predicated region
      $region53: #{net_forward.1} parent=5 // pred_check
        %p339 = pneg %p338
      $region54: #{net_forward.1} parent=5 // pred_check_branch
        %341 = sbr.rel (%p339) target = $region56
      $region55: #{net_forward.1} parent=5 // pred_region
        // Predicated region
        $region57: #{net_forward.1} parent=55 // pred_check
          %p342 = pneg %p41
        $region58: #{net_forward.1} parent=55 // pred_check_branch
          %344 = sbr.rel (%p342) target = $region60
        $region59: #{net_forward.1} parent=55 // pred_region
          %p345 = scmp.lt.s32.totalorder %s21, 1
          %s346 = scalar_select %p345, %s21, 1
          %s347 = smul.addr %s346, 4
          %s348 = smul.addr %s347, 8
          %s349 = scalar_lea.vmem %s0, %s348
        $region60: #{net_forward.1} parent=55 // pred_fallthru
          _
      $region56: #{net_forward.1} parent=5 // pred_fallthru
        _
      %p350 = scmp.le.s32.totalorder 1, %s21
      %p351 = scmp.lt.s32.totalorder %s21, 3
      %p352 = pnand %p350, %p351
      %p353 = pneg %p352
      // Predicated region
      $region61: #{net_forward.1} parent=5 // pred_check
        _
      $region62: #{net_forward.1} parent=5 // pred_check_branch
        %355 = sbr.rel (%p352) target = $region64
      $region63: #{net_forward.1} parent=5 // pred_region
        %s356 = ssub.s32 %s21, 1
        // Predicated region
        $region65: #{net_forward.1} parent=63 // pred_check
          %p357 = pneg %p68
        $region66: #{net_forward.1} parent=63 // pred_check_branch
          %359 = sbr.rel (%p357) target = $region68
        $region67: #{net_forward.1} parent=63 // pred_region
          %360 = dma.done [#allocation6], 15360
        $region68: #{net_forward.1} parent=63 // pred_fallthru
          _
        %p361 = scmp.lt.s32.totalorder %s26, 1
        %s362 = scalar_select %p361, %s26, 1
        %s363 = smul.addr %s362, 4
        %s364 = smul.addr %s363, 8
        %s365 = scalar_lea.vmem %s0, %s364
        %p366 = pneg %p47
        %p367 = pneg %p44
        %p368 = pneg %p68
        %p369 = pneg %p65
        %p370 = pneg %p89
        %p371 = pneg %p86
        %p372 = pneg %p110
        %p373 = pneg %p107
        %p374 = pneg %p131
        %p375 = pneg %p128
        %p376 = pneg %p152
        %p377 = pneg %p149
        %p378 = pneg %p173
        %p379 = pneg %p170
        %p380 = pneg %p194
        %p381 = pneg %p191
        %p382 = pneg %p215
        %p383 = pneg %p212
        %p384 = pneg %p236
        %p385 = pneg %p233
        %p386 = pneg %p257
        %p387 = pneg %p254
        %p388 = pneg %p283
        %p389 = pneg %p280
        %s390 = sand.u32 %s270, 1
        %s391 = scalar_lea.sflag [#allocation7], %s390
        %s392 = sand.u32 %s270, 1
        %s393 = scalar_lea.vmem [#allocation8], %s392
        %p394 = scmp.lt.s32.totalorder %s26, 1
        %s395 = scalar_select %p394, %s26, 1
        %s396 = smul.addr %s395, 4
        %s397 = smul.addr %s396, 8
        %s398 = scalar_lea.vmem %s0, %s397
        %v399 = vld [vmem:[%s398] sm:$0xff]
        %v400 = vld [vmem:[%s398 + $0x8] sm:$0xff]
        %v401 = vld [vmem:[%s398 + $0x10] sm:$0xff]
        %v402 = vld [vmem:[%s398 + $0x18] sm:$0xf]
        %v403 = vld [vmem:[#allocation5] sm:$0xff]
        %v404 = vld [vmem:[#allocation5 + $0x8] sm:$0xff]
        %v405 = vld [vmem:[#allocation5 + $0x10] sm:$0xff]
        %v406 = vld [vmem:[#allocation5 + $0x18] sm:$0xff]
        %v407 = vld [vmem:[#allocation5 + $0x20] sm:$0xff]
        %v408 = vld [vmem:[#allocation5 + $0x28] sm:$0xff]
        %v409 = vld [vmem:[#allocation5 + $0x30] sm:$0xff]
        %v410 = vld [vmem:[#allocation5 + $0x38] sm:$0xff]
        %v411 = vld [vmem:[#allocation5 + $0x40] sm:$0xff]
        %v412 = vld [vmem:[#allocation5 + $0x48] sm:$0xff]
        %v413 = vld [vmem:[#allocation5 + $0x50] sm:$0xff]
        %v414 = vld [vmem:[#allocation5 + $0x58] sm:$0xff]
        %v415 = vld [vmem:[#allocation5 + $0x60] sm:$0xff]
        %v416 = vld [vmem:[#allocation5 + $0x68] sm:$0xff]
        %v417 = vld [vmem:[#allocation5 + $0x70] sm:$0xff]
        %v418 = vld [vmem:[#allocation5 + $0x78] sm:$0xff]
        %v419 = vld [vmem:[#allocation5 + $0x80] sm:$0xff]
        %v420 = vld [vmem:[#allocation5 + $0x88] sm:$0xff]
        %v421 = vld [vmem:[#allocation5 + $0x90] sm:$0xff]
        %v422 = vld [vmem:[#allocation5 + $0x98] sm:$0xff]
        %v423 = vld [vmem:[#allocation5 + $0xa0] sm:$0xff]
        %v424 = vld [vmem:[#allocation5 + $0xa8] sm:$0xff]
        %v425 = vld [vmem:[#allocation5 + $0xb0] sm:$0xff]
        %v426 = vld [vmem:[#allocation5 + $0xb8] sm:$0xff]
        %v427 = vld [vmem:[%s398 + $0x1] sm:$0xff]
        %v428 = vld [vmem:[%s398 + $0x9] sm:$0xff]
        %v429 = vld [vmem:[%s398 + $0x11] sm:$0xff]
        %v430 = vld [vmem:[%s398 + $0x19] sm:$0xf]
        %s431 = scalar_lea.vmem [#allocation5], 192
        %v432 = vld [vmem:[%s431] sm:$0xff]
        %v433 = vld [vmem:[%s431 + $0x8] sm:$0xff]
        %v434 = vld [vmem:[%s431 + $0x10] sm:$0xff]
        %v435 = vld [vmem:[%s431 + $0x18] sm:$0xff]
        %v436 = vld [vmem:[%s431 + $0x20] sm:$0xff]
        %v437 = vld [vmem:[%s431 + $0x28] sm:$0xff]
        %v438 = vld [vmem:[%s431 + $0x30] sm:$0xff]
        %v439 = vld [vmem:[%s431 + $0x38] sm:$0xff]
        %v440 = vld [vmem:[%s431 + $0x40] sm:$0xff]
        %v441 = vld [vmem:[%s431 + $0x48] sm:$0xff]
        %v442 = vld [vmem:[%s431 + $0x50] sm:$0xff]
        %v443 = vld [vmem:[%s431 + $0x58] sm:$0xff]
        %v444 = vld [vmem:[%s431 + $0x60] sm:$0xff]
        %v445 = vld [vmem:[%s431 + $0x68] sm:$0xff]
        %v446 = vld [vmem:[%s431 + $0x70] sm:$0xff]
        %v447 = vld [vmem:[%s431 + $0x78] sm:$0xff]
        %v448 = vld [vmem:[%s431 + $0x80] sm:$0xff]
        %v449 = vld [vmem:[%s431 + $0x88] sm:$0xff]
        %v450 = vld [vmem:[%s431 + $0x90] sm:$0xff]
        %v451 = vld [vmem:[%s431 + $0x98] sm:$0xff]
        %v452 = vld [vmem:[%s431 + $0xa0] sm:$0xff]
        %v453 = vld [vmem:[%s431 + $0xa8] sm:$0xff]
        %v454 = vld [vmem:[%s431 + $0xb0] sm:$0xff]
        %v455 = vld [vmem:[%s431 + $0xb8] sm:$0xff]
        %vm456 = vcmask 785408
        %v458 = vsel %vm456, %v427, 0
        %v461 = vsel %vm456, %v428, 0
        %v464 = vsel %vm456, %v429, 0
        %v467 = vsel %vm456, %v430, 0
        %469 = vmatprep.subr.mxu0 %v433
        %470 = vmatpush1.msra.mxu0 %v432
        %471 = vmatprep.subr.mxu0 %v435
        %472 = vmatpush1.msra.mxu0 %v434
        %473 = vmatprep.subr.mxu0 %v437
        %474 = vmatpush1.msra.mxu0 %v436
        %475 = vmatprep.subr.mxu0 %v439
        %476 = vmatpush1.msra.mxu0 %v438
        %477 = vmatprep.subr.mxu0 %v441
        %478 = vmatpush1.msra.mxu0 %v440
        %479 = vmatprep.subr.mxu0 %v443
        %480 = vmatpush1.msra.mxu0 %v442
        %481 = vmatprep.subr.mxu0 %v445
        %482 = vmatpush1.msra.mxu0 %v444
        %483 = vmatprep.subr.mxu0 %v447
        %484 = vmatpush1.msra.mxu0 %v446
        %485 = vmatprep.subr.mxu0 %v449
        %486 = vmatpush1.msra.mxu0 %v448
        %487 = vmatprep.subr.mxu0 %v451
        %488 = vmatpush1.msra.mxu0 %v450
        %489 = vmatprep.subr.mxu0 %v453
        %490 = vmatpush1.msra.mxu0 %v452
        %491 = vmatprep.subr.mxu0 %v455
        %492 = vmatpush1.msra.mxu0 %v454
        %493 = vmatprep.subr.mxu0 0.0
        %494 = vmatpush1.msra.mxu0 0.0
        %495 = vmatprep.subr.mxu0 0.0
        %496 = vmatpush1.msra.mxu0 0.0
        %497 = vmatprep.subr.mxu0 0.0
        %498 = vmatpush1.msra.mxu0 0.0
        %499 = vmatprep.subr.mxu0 0.0
        %500 = vmatpush1.msra.mxu0 0.0
        %501 = vmatprep.subr.mxu0 0.0
        %502 = vmatpush1.msra.mxu0 0.0
        %503 = vmatprep.subr.mxu0 0.0
        %504 = vmatpush1.msra.mxu0 0.0
        %505 = vmatprep.subr.mxu0 0.0
        %506 = vmatpush1.msra.mxu0 0.0
        %507 = vmatprep.subr.mxu0 0.0
        %508 = vmatpush1.msra.mxu0 0.0
        %509 = vmatprep.subr.mxu0 0.0
        %510 = vmatpush1.msra.mxu0 0.0
        %511 = vmatprep.subr.mxu0 0.0
        %512 = vmatpush1.msra.mxu0 0.0
        %513 = vmatprep.subr.mxu0 0.0
        %514 = vmatpush1.msra.mxu0 0.0
        %515 = vmatprep.subr.mxu0 0.0
        %516 = vmatpush1.msra.mxu0 0.0
        %517 = vmatprep.subr.mxu0 0.0
        %518 = vmatpush1.msra.mxu0 0.0
        %519 = vmatprep.subr.mxu0 0.0
        %520 = vmatpush1.msra.mxu0 0.0
        %521 = vmatprep.subr.mxu0 0.0
        %522 = vmatpush1.msra.mxu0 0.0
        %523 = vmatprep.subr.mxu0 0.0
        %524 = vmatpush1.msra.mxu0 0.0
        %525 = vmatprep.subr.mxu0 0.0
        %526 = vmatpush1.msra.mxu0 0.0
        %527 = vmatprep.subr.mxu0 0.0
        %528 = vmatpush1.msra.mxu0 0.0
        %529 = vmatprep.subr.mxu0 0.0
        %530 = vmatpush1.msra.mxu0 0.0
        %531 = vmatprep.subr.mxu0 0.0
        %532 = vmatpush1.msra.mxu0 0.0
        %533 = vmatprep.mubr.f32.mxu0 0.0
        %534 = vmatmul.mubr.f32.gmra.mrb[0].mxu0 %v458
        %v535 = vpop.f32.mrb[0].mxu0
        %v536 = vadd.f32 0.0, %v535
        %v537 = vpop.f32.mrb[0].mxu0
        %v538 = vadd.f32 0.0, %v537
        %539 = vmatprep.mubr.f32.mxu0 0.0
        %540 = vmatmul.mubr.f32.gmra.mrb[0].mxu0 %v461
        %v541 = vpop.f32.mrb[0].mxu0
        %v542 = vadd.f32 0.0, %v541
        %v543 = vpop.f32.mrb[0].mxu0
        %v544 = vadd.f32 0.0, %v543
        %545 = vmatprep.mubr.f32.mxu0 0.0
        %546 = vmatmul.mubr.f32.gmra.mrb[0].mxu0 %v464
        %v547 = vpop.f32.mrb[0].mxu0
        %v548 = vadd.f32 0.0, %v547
        %v549 = vpop.f32.mrb[0].mxu0
        %v550 = vadd.f32 0.0, %v549
        %551 = vmatprep.mubr.f32.mxu0 0.0
        %552 = vmatmul.mubr.f32.gmra.mrb[0].mxu0 %v467
        %v553 = vpop.f32.mrb[0].mxu0
        %v554 = vadd.f32 0.0, %v553
        %v555 = vpop.f32.mrb[0].mxu0
        %v556 = vadd.f32 0.0, %v555
        %557 = vdwg.mxu0
        %v559 = vsel %vm456, %v399, 0
        %v562 = vsel %vm456, %v400, 0
        %v565 = vsel %vm456, %v401, 0
        %v568 = vsel %vm456, %v402, 0
        %570 = vmatprep.subr.mxu0 %v404
        %571 = vmatpush1.msra.mxu0 %v403
        %572 = vmatprep.subr.mxu0 %v406
        %573 = vmatpush1.msra.mxu0 %v405
        %574 = vmatprep.subr.mxu0 %v408
        %575 = vmatpush1.msra.mxu0 %v407
        %576 = vmatprep.subr.mxu0 %v410
        %577 = vmatpush1.msra.mxu0 %v409
        %578 = vmatprep.subr.mxu0 %v412
        %579 = vmatpush1.msra.mxu0 %v411
        %580 = vmatprep.subr.mxu0 %v414
        %581 = vmatpush1.msra.mxu0 %v413
        %582 = vmatprep.subr.mxu0 %v416
        %583 = vmatpush1.msra.mxu0 %v415
        %584 = vmatprep.subr.mxu0 %v418
        %585 = vmatpush1.msra.mxu0 %v417
        %586 = vmatprep.subr.mxu0 %v420
        %587 = vmatpush1.msra.mxu0 %v419
        %588 = vmatprep.subr.mxu0 %v422
        %589 = vmatpush1.msra.mxu0 %v421
        %590 = vmatprep.subr.mxu0 %v424
        %591 = vmatpush1.msra.mxu0 %v423
        %592 = vmatprep.subr.mxu0 %v426
        %593 = vmatpush1.msra.mxu0 %v425
        %594 = vmatprep.subr.mxu0 0.0
        %595 = vmatpush1.msra.mxu0 0.0
        %596 = vmatprep.subr.mxu0 0.0
        %597 = vmatpush1.msra.mxu0 0.0
        %598 = vmatprep.subr.mxu0 0.0
        %599 = vmatpush1.msra.mxu0 0.0
        %600 = vmatprep.subr.mxu0 0.0
        %601 = vmatpush1.msra.mxu0 0.0
        %602 = vmatprep.subr.mxu0 0.0
        %603 = vmatpush1.msra.mxu0 0.0
        %604 = vmatprep.subr.mxu0 0.0
        %605 = vmatpush1.msra.mxu0 0.0
        %606 = vmatprep.subr.mxu0 0.0
        %607 = vmatpush1.msra.mxu0 0.0
        %608 = vmatprep.subr.mxu0 0.0
        %609 = vmatpush1.msra.mxu0 0.0
        %610 = vmatprep.subr.mxu0 0.0
        %611 = vmatpush1.msra.mxu0 0.0
        %612 = vmatprep.subr.mxu0 0.0
        %613 = vmatpush1.msra.mxu0 0.0
        %614 = vmatprep.subr.mxu0 0.0
        %615 = vmatpush1.msra.mxu0 0.0
        %616 = vmatprep.subr.mxu0 0.0
        %617 = vmatpush1.msra.mxu0 0.0
        %618 = vmatprep.subr.mxu0 0.0
        %619 = vmatpush1.msra.mxu0 0.0
        %620 = vmatprep.subr.mxu0 0.0
        %621 = vmatpush1.msra.mxu0 0.0
        %622 = vmatprep.subr.mxu0 0.0
        %623 = vmatpush1.msra.mxu0 0.0
        %624 = vmatprep.subr.mxu0 0.0
        %625 = vmatpush1.msra.mxu0 0.0
        %626 = vmatprep.subr.mxu0 0.0
        %627 = vmatpush1.msra.mxu0 0.0
        %628 = vmatprep.subr.mxu0 0.0
        %629 = vmatpush1.msra.mxu0 0.0
        %630 = vmatprep.subr.mxu0 0.0
        %631 = vmatpush1.msra.mxu0 0.0
        %632 = vmatprep.subr.mxu0 0.0
        %633 = vmatpush1.msra.mxu0 0.0
        %634 = vmatprep.mubr.f32.mxu0 0.0
        %635 = vmatmul.mubr.f32.gmra.mrb[0].mxu0 %v559
        %v636 = vpop.f32.mrb[0].mxu0
        %v637 = vadd.f32 %v536, %v636
        %v638 = vpop.f32.mrb[0].mxu0
        %v639 = vadd.f32 %v538, %v638
        %640 = vmatprep.mubr.f32.mxu0 0.0
        %641 = vmatmul.mubr.f32.gmra.mrb[0].mxu0 %v562
        %v642 = vpop.f32.mrb[0].mxu0
        %v643 = vadd.f32 %v542, %v642
        %v644 = vpop.f32.mrb[0].mxu0
        %v645 = vadd.f32 %v544, %v644
        %646 = vmatprep.mubr.f32.mxu0 0.0
        %647 = vmatmul.mubr.f32.gmra.mrb[0].mxu0 %v565
        %v648 = vpop.f32.mrb[0].mxu0
        %v649 = vadd.f32 %v548, %v648
        %v650 = vpop.f32.mrb[0].mxu0
        %v651 = vadd.f32 %v550, %v650
        %652 = vmatprep.mubr.f32.mxu0 0.0
        %653 = vmatmul.mubr.f32.gmra.mrb[0].mxu0 %v568
        %v654 = vpop.f32.mrb[0].mxu0
        %v655 = vadd.f32 %v554, %v654
        %v656 = vpop.f32.mrb[0].mxu0
        %v657 = vadd.f32 %v556, %v656
        %658 = vdwg.mxu0
        %v659 = vld [vmem:[%s398 + $0x2] sm:$0xff]
        %v660 = vld [vmem:[%s398 + $0xa] sm:$0xff]
        %v661 = vld [vmem:[%s398 + $0x12] sm:$0xff]
        %v662 = vld [vmem:[%s398 + $0x1a] sm:$0xf]
        %s663 = scalar_lea.vmem [#allocation5], 384
        %v664 = vld [vmem:[%s663] sm:$0xff]
        %v665 = vld [vmem:[%s663 + $0x8] sm:$0xff]
        %v666 = vld [vmem:[%s663 + $0x10] sm:$0xff]
        %v667 = vld [vmem:[%s663 + $0x18] sm:$0xff]
        %v668 = vld [vmem:[%s663 + $0x20] sm:$0xff]
        %v669 = vld [vmem:[%s663 + $0x28] sm:$0xff]
        %v670 = vld [vmem:[%s663 + $0x30] sm:$0xff]
        %v671 = vld [vmem:[%s663 + $0x38] sm:$0xff]
        %v672 = vld [vmem:[%s663 + $0x40] sm:$0xff]
        %v673 = vld [vmem:[%s663 + $0x48] sm:$0xff]
        %v674 = vld [vmem:[%s663 + $0x50] sm:$0xff]
        %v675 = vld [vmem:[%s663 + $0x58] sm:$0xff]
        %v676 = vld [vmem:[%s663 + $0x60] sm:$0xff]
        %v677 = vld [vmem:[%s663 + $0x68] sm:$0xff]
        %v678 = vld [vmem:[%s663 + $0x70] sm:$0xff]
        %v679 = vld [vmem:[%s663 + $0x78] sm:$0xff]
        %v680 = vld [vmem:[%s663 + $0x80] sm:$0xff]
        %v681 = vld [vmem:[%s663 + $0x88] sm:$0xff]
        %v682 = vld [vmem:[%s663 + $0x90] sm:$0xff]
        %v683 = vld [vmem:[%s663 + $0x98] sm:$0xff]
        %v684 = vld [vmem:[%s663 + $0xa0] sm:$0xff]
        %v685 = vld [vmem:[%s663 + $0xa8] sm:$0xff]
        %v686 = vld [vmem:[%s663 + $0xb0] sm:$0xff]
        %v687 = vld [vmem:[%s663 + $0xb8] sm:$0xff]
        %v689 = vsel %vm456, %v659, 0
        %v692 = vsel %vm456, %v660, 0
        %v695 = vsel %vm456, %v661, 0
        %v698 = vsel %vm456, %v662, 0
        %700 = vmatprep.subr.mxu0 %v665
        %701 = vmatpush1.msra.mxu0 %v664
        %702 = vmatprep.subr.mxu0 %v667
        %703 = vmatpush1.msra.mxu0 %v666
        %704 = vmatprep.subr.mxu0 %v669
        %705 = vmatpush1.msra.mxu0 %v668
        %706 = vmatprep.subr.mxu0 %v671
        %707 = vmatpush1.msra.mxu0 %v670
        %708 = vmatprep.subr.mxu0 %v673
        %709 = vmatpush1.msra.mxu0 %v672
        %710 = vmatprep.subr.mxu0 %v675
        %711 = vmatpush1.msra.mxu0 %v674
        %712 = vmatprep.subr.mxu0 %v677
        %713 = vmatpush1.msra.mxu0 %v676
        %714 = vmatprep.subr.mxu0 %v679
        %715 = vmatpush1.msra.mxu0 %v678
        %716 = vmatprep.subr.mxu0 %v681
        %717 = vmatpush1.msra.mxu0 %v680
        %718 = vmatprep.subr.mxu0 %v683
        %719 = vmatpush1.msra.mxu0 %v682
        %720 = vmatprep.subr.mxu0 %v685
        %721 = vmatpush1.msra.mxu0 %v684
        %722 = vmatprep.subr.mxu0 %v687
        %723 = vmatpush1.msra.mxu0 %v686
        %724 = vmatprep.subr.mxu0 0.0
        %725 = vmatpush1.msra.mxu0 0.0
        %726 = vmatprep.subr.mxu0 0.0
        %727 = vmatpush1.msra.mxu0 0.0
        %728 = vmatprep.subr.mxu0 0.0
        %729 = vmatpush1.msra.mxu0 0.0
        %730 = vmatprep.subr.mxu0 0.0
        %731 = vmatpush1.msra.mxu0 0.0
        %732 = vmatprep.subr.mxu0 0.0
        %733 = vmatpush1.msra.mxu0 0.0
        %734 = vmatprep.subr.mxu0 0.0
        %735 = vmatpush1.msra.mxu0 0.0
        %736 = vmatprep.subr.mxu0 0.0
        %737 = vmatpush1.msra.mxu0 0.0
        %738 = vmatprep.subr.mxu0 0.0
        %739 = vmatpush1.msra.mxu0 0.0
        %740 = vmatprep.subr.mxu0 0.0
        %741 = vmatpush1.msra.mxu0 0.0
        %742 = vmatprep.subr.mxu0 0.0
        %743 = vmatpush1.msra.mxu0 0.0
        %744 = vmatprep.subr.mxu0 0.0
        %745 = vmatpush1.msra.mxu0 0.0
        %746 = vmatprep.subr.mxu0 0.0
        %747 = vmatpush1.msra.mxu0 0.0
        %748 = vmatprep.subr.mxu0 0.0
        %749 = vmatpush1.msra.mxu0 0.0
        %750 = vmatprep.subr.mxu0 0.0
        %751 = vmatpush1.msra.mxu0 0.0
        %752 = vmatprep.subr.mxu0 0.0
        %753 = vmatpush1.msra.mxu0 0.0
        %754 = vmatprep.subr.mxu0 0.0
        %755 = vmatpush1.msra.mxu0 0.0
        %756 = vmatprep.subr.mxu0 0.0
        %757 = vmatpush1.msra.mxu0 0.0
        %758 = vmatprep.subr.mxu0 0.0
        %759 = vmatpush1.msra.mxu0 0.0
        %760 = vmatprep.subr.mxu0 0.0
        %761 = vmatpush1.msra.mxu0 0.0
        %762 = vmatprep.subr.mxu0 0.0
        %763 = vmatpush1.msra.mxu0 0.0
        %764 = vmatprep.mubr.f32.mxu0 0.0
        %765 = vmatmul.mubr.f32.gmra.mrb[0].mxu0 %v689
        %v766 = vpop.f32.mrb[0].mxu0
        %v767 = vadd.f32 0.0, %v766
        %v768 = vpop.f32.mrb[0].mxu0
        %v769 = vadd.f32 0.0, %v768
        %770 = vmatprep.mubr.f32.mxu0 0.0
        %771 = vmatmul.mubr.f32.gmra.mrb[0].mxu0 %v692
        %v772 = vpop.f32.mrb[0].mxu0
        %v773 = vadd.f32 0.0, %v772
        %v774 = vpop.f32.mrb[0].mxu0
        %v775 = vadd.f32 0.0, %v774
        %776 = vmatprep.mubr.f32.mxu0 0.0
        %777 = vmatmul.mubr.f32.gmra.mrb[0].mxu0 %v695
        %v778 = vpop.f32.mrb[0].mxu0
        %v779 = vadd.f32 0.0, %v778
        %v780 = vpop.f32.mrb[0].mxu0
        %v781 = vadd.f32 0.0, %v780
        %782 = vmatprep.mubr.f32.mxu0 0.0
        %783 = vmatmul.mubr.f32.gmra.mrb[0].mxu0 %v698
        %v784 = vpop.f32.mrb[0].mxu0
        %v785 = vadd.f32 0.0, %v784
        %v786 = vpop.f32.mrb[0].mxu0
        %v787 = vadd.f32 0.0, %v786
        %788 = vdwg.mxu0
        %v789 = vadd.f32 %v637, %v767
        %v790 = vadd.f32 %v639, %v769
        %v791 = vadd.f32 %v643, %v773
        %v792 = vadd.f32 %v645, %v775
        %v793 = vadd.f32 %v649, %v779
        %v794 = vadd.f32 %v651, %v781
        %v795 = vadd.f32 %v655, %v785
        %v796 = vadd.f32 %v657, %v787
        %v797 = vld [vmem:[%s398 + $0x3] sm:$0xff]
        %v798 = vld [vmem:[%s398 + $0xb] sm:$0xff]
        %v799 = vld [vmem:[%s398 + $0x13] sm:$0xff]
        %v800 = vld [vmem:[%s398 + $0x1b] sm:$0xf]
        %s801 = scalar_lea.vmem [#allocation5], 576
        %v802 = vld [vmem:[%s801] sm:$0xff]
        %v803 = vld [vmem:[%s801 + $0x8] sm:$0xff]
        %v804 = vld [vmem:[%s801 + $0x10] sm:$0xff]
        %v805 = vld [vmem:[%s801 + $0x18] sm:$0xff]
        %v806 = vld [vmem:[%s801 + $0x20] sm:$0xff]
        %v807 = vld [vmem:[%s801 + $0x28] sm:$0xff]
        %v808 = vld [vmem:[%s801 + $0x30] sm:$0xff]
        %v809 = vld [vmem:[%s801 + $0x38] sm:$0xff]
        %v810 = vld [vmem:[%s801 + $0x40] sm:$0xff]
        %v811 = vld [vmem:[%s801 + $0x48] sm:$0xff]
        %v812 = vld [vmem:[%s801 + $0x50] sm:$0xff]
        %v813 = vld [vmem:[%s801 + $0x58] sm:$0xff]
        %v814 = vld [vmem:[%s801 + $0x60] sm:$0xff]
        %v815 = vld [vmem:[%s801 + $0x68] sm:$0xff]
        %v816 = vld [vmem:[%s801 + $0x70] sm:$0xff]
        %v817 = vld [vmem:[%s801 + $0x78] sm:$0xff]
        %v818 = vld [vmem:[%s801 + $0x80] sm:$0xff]
        %v819 = vld [vmem:[%s801 + $0x88] sm:$0xff]
        %v820 = vld [vmem:[%s801 + $0x90] sm:$0xff]
        %v821 = vld [vmem:[%s801 + $0x98] sm:$0xff]
        %v822 = vld [vmem:[%s801 + $0xa0] sm:$0xff]
        %v823 = vld [vmem:[%s801 + $0xa8] sm:$0xff]
        %v824 = vld [vmem:[%s801 + $0xb0] sm:$0xff]
        %v825 = vld [vmem:[%s801 + $0xb8] sm:$0xff]
        %v827 = vsel %vm456, %v797, 0
        %v830 = vsel %vm456, %v798, 0
        %v833 = vsel %vm456, %v799, 0
        %v836 = vsel %vm456, %v800, 0
        %838 = vmatprep.subr.mxu0 %v803
        %839 = vmatpush1.msra.mxu0 %v802
        %840 = vmatprep.subr.mxu0 %v805
        %841 = vmatpush1.msra.mxu0 %v804
        %842 = vmatprep.subr.mxu0 %v807
        %843 = vmatpush1.msra.mxu0 %v806
        %844 = vmatprep.subr.mxu0 %v809
        %845 = vmatpush1.msra.mxu0 %v808
        %846 = vmatprep.subr.mxu0 %v811
        %847 = vmatpush1.msra.mxu0 %v810
        %848 = vmatprep.subr.mxu0 %v813
        %849 = vmatpush1.msra.mxu0 %v812
        %850 = vmatprep.subr.mxu0 %v815
        %851 = vmatpush1.msra.mxu0 %v814
        %852 = vmatprep.subr.mxu0 %v817
        %853 = vmatpush1.msra.mxu0 %v816
        %854 = vmatprep.subr.mxu0 %v819
        %855 = vmatpush1.msra.mxu0 %v818
        %856 = vmatprep.subr.mxu0 %v821
        %857 = vmatpush1.msra.mxu0 %v820
        %858 = vmatprep.subr.mxu0 %v823
        %859 = vmatpush1.msra.mxu0 %v822
        %860 = vmatprep.subr.mxu0 %v825
        %861 = vmatpush1.msra.mxu0 %v824
        %862 = vmatprep.subr.mxu0 0.0
        %863 = vmatpush1.msra.mxu0 0.0
        %864 = vmatprep.subr.mxu0 0.0
        %865 = vmatpush1.msra.mxu0 0.0
        %866 = vmatprep.subr.mxu0 0.0
        %867 = vmatpush1.msra.mxu0 0.0
        %868 = vmatprep.subr.mxu0 0.0
        %869 = vmatpush1.msra.mxu0 0.0
        %870 = vmatprep.subr.mxu0 0.0
        %871 = vmatpush1.msra.mxu0 0.0
        %872 = vmatprep.subr.mxu0 0.0
        %873 = vmatpush1.msra.mxu0 0.0
        %874 = vmatprep.subr.mxu0 0.0
        %875 = vmatpush1.msra.mxu0 0.0
        %876 = vmatprep.subr.mxu0 0.0
        %877 = vmatpush1.msra.mxu0 0.0
        %878 = vmatprep.subr.mxu0 0.0
        %879 = vmatpush1.msra.mxu0 0.0
        %880 = vmatprep.subr.mxu0 0.0
        %881 = vmatpush1.msra.mxu0 0.0
        %882 = vmatprep.subr.mxu0 0.0
        %883 = vmatpush1.msra.mxu0 0.0
        %884 = vmatprep.subr.mxu0 0.0
        %885 = vmatpush1.msra.mxu0 0.0
        %886 = vmatprep.subr.mxu0 0.0
        %887 = vmatpush1.msra.mxu0 0.0
        %888 = vmatprep.subr.mxu0 0.0
        %889 = vmatpush1.msra.mxu0 0.0
        %890 = vmatprep.subr.mxu0 0.0
        %891 = vmatpush1.msra.mxu0 0.0
        %892 = vmatprep.subr.mxu0 0.0
        %893 = vmatpush1.msra.mxu0 0.0
        %894 = vmatprep.subr.mxu0 0.0
        %895 = vmatpush1.msra.mxu0 0.0
        %896 = vmatprep.subr.mxu0 0.0
        %897 = vmatpush1.msra.mxu0 0.0
        %898 = vmatprep.subr.mxu0 0.0
        %899 = vmatpush1.msra.mxu0 0.0
        %900 = vmatprep.subr.mxu0 0.0
        %901 = vmatpush1.msra.mxu0 0.0
        %902 = vmatprep.mubr.f32.mxu0 0.0
        %903 = vmatmul.mubr.f32.gmra.mrb[0].mxu0 %v827
        %v904 = vpop.f32.mrb[0].mxu0
        %v905 = vadd.f32 0.0, %v904
        %v906 = vpop.f32.mrb[0].mxu0
        %v907 = vadd.f32 0.0, %v906
        %908 = vmatprep.mubr.f32.mxu0 0.0
        %909 = vmatmul.mubr.f32.gmra.mrb[0].mxu0 %v830
        %v910 = vpop.f32.mrb[0].mxu0
        %v911 = vadd.f32 0.0, %v910
        %v912 = vpop.f32.mrb[0].mxu0
        %v913 = vadd.f32 0.0, %v912
        %914 = vmatprep.mubr.f32.mxu0 0.0
        %915 = vmatmul.mubr.f32.gmra.mrb[0].mxu0 %v833
        %v916 = vpop.f32.mrb[0].mxu0
        %v917 = vadd.f32 0.0, %v916
        %v918 = vpop.f32.mrb[0].mxu0
        %v919 = vadd.f32 0.0, %v918
        %920 = vmatprep.mubr.f32.mxu0 0.0
        %921 = vmatmul.mubr.f32.gmra.mrb[0].mxu0 %v836
        %v922 = vpop.f32.mrb[0].mxu0
        %v923 = vadd.f32 0.0, %v922
        %v924 = vpop.f32.mrb[0].mxu0
        %v925 = vadd.f32 0.0, %v924
        %926 = vdwg.mxu0
        %v927 = vadd.f32 %v789, %v905
        %v928 = vadd.f32 %v790, %v907
        %v929 = vadd.f32 %v791, %v911
        %v930 = vadd.f32 %v792, %v913
        %v931 = vadd.f32 %v793, %v917
        %v932 = vadd.f32 %v794, %v919
        %v933 = vadd.f32 %v795, %v923
        %v934 = vadd.f32 %v796, %v925
        %v935 = vld [vmem:[%s398 + $0x4] sm:$0xff]
        %v936 = vld [vmem:[%s398 + $0xc] sm:$0xff]
        %v937 = vld [vmem:[%s398 + $0x14] sm:$0xff]
        %v938 = vld [vmem:[%s398 + $0x1c] sm:$0xf]
        %s939 = scalar_lea.vmem [#allocation5], 768
        %v940 = vld [vmem:[%s939] sm:$0xff]
        %v941 = vld [vmem:[%s939 + $0x8] sm:$0xff]
        %v942 = vld [vmem:[%s939 + $0x10] sm:$0xff]
        %v943 = vld [vmem:[%s939 + $0x18] sm:$0xff]
        %v944 = vld [vmem:[%s939 + $0x20] sm:$0xff]
        %v945 = vld [vmem:[%s939 + $0x28] sm:$0xff]
        %v946 = vld [vmem:[%s939 + $0x30] sm:$0xff]
        %v947 = vld [vmem:[%s939 + $0x38] sm:$0xff]
        %v948 = vld [vmem:[%s939 + $0x40] sm:$0xff]
        %v949 = vld [vmem:[%s939 + $0x48] sm:$0xff]
        %v950 = vld [vmem:[%s939 + $0x50] sm:$0xff]
        %v951 = vld [vmem:[%s939 + $0x58] sm:$0xff]
        %v952 = vld [vmem:[%s939 + $0x60] sm:$0xff]
        %v953 = vld [vmem:[%s939 + $0x68] sm:$0xff]
        %v954 = vld [vmem:[%s939 + $0x70] sm:$0xff]
        %v955 = vld [vmem:[%s939 + $0x78] sm:$0xff]
        %v956 = vld [vmem:[%s939 + $0x80] sm:$0xff]
        %v957 = vld [vmem:[%s939 + $0x88] sm:$0xff]
        %v958 = vld [vmem:[%s939 + $0x90] sm:$0xff]
        %v959 = vld [vmem:[%s939 + $0x98] sm:$0xff]
        %v960 = vld [vmem:[%s939 + $0xa0] sm:$0xff]
        %v961 = vld [vmem:[%s939 + $0xa8] sm:$0xff]
        %v962 = vld [vmem:[%s939 + $0xb0] sm:$0xff]
        %v963 = vld [vmem:[%s939 + $0xb8] sm:$0xff]
        %v965 = vsel %vm456, %v935, 0
        %v968 = vsel %vm456, %v936, 0
        %v971 = vsel %vm456, %v937, 0
        %v974 = vsel %vm456, %v938, 0
        %976 = vmatprep.subr.mxu0 %v941
        %977 = vmatpush1.msra.mxu0 %v940
        %978 = vmatprep.subr.mxu0 %v943
        %979 = vmatpush1.msra.mxu0 %v942
        %980 = vmatprep.subr.mxu0 %v945
        %981 = vmatpush1.msra.mxu0 %v944
        %982 = vmatprep.subr.mxu0 %v947
        %983 = vmatpush1.msra.mxu0 %v946
        %984 = vmatprep.subr.mxu0 %v949
        %985 = vmatpush1.msra.mxu0 %v948
        %986 = vmatprep.subr.mxu0 %v951
        %987 = vmatpush1.msra.mxu0 %v950
        %988 = vmatprep.subr.mxu0 %v953
        %989 = vmatpush1.msra.mxu0 %v952
        %990 = vmatprep.subr.mxu0 %v955
        %991 = vmatpush1.msra.mxu0 %v954
        %992 = vmatprep.subr.mxu0 %v957
        %993 = vmatpush1.msra.mxu0 %v956
        %994 = vmatprep.subr.mxu0 %v959
        %995 = vmatpush1.msra.mxu0 %v958
        %996 = vmatprep.subr.mxu0 %v961
        %997 = vmatpush1.msra.mxu0 %v960
        %998 = vmatprep.subr.mxu0 %v963
        %999 = vmatpush1.msra.mxu0 %v962
        %1000 = vmatprep.subr.mxu0 0.0
        %1001 = vmatpush1.msra.mxu0 0.0
        %1002 = vmatprep.subr.mxu0 0.0
        %1003 = vmatpush1.msra.mxu0 0.0
        %1004 = vmatprep.subr.mxu0 0.0
        %1005 = vmatpush1.msra.mxu0 0.0
        %1006 = vmatprep.subr.mxu0 0.0
        %1007 = vmatpush1.msra.mxu0 0.0
        %1008 = vmatprep.subr.mxu0 0.0
        %1009 = vmatpush1.msra.mxu0 0.0
        %1010 = vmatprep.subr.mxu0 0.0
        %1011 = vmatpush1.msra.mxu0 0.0
        %1012 = vmatprep.subr.mxu0 0.0
        %1013 = vmatpush1.msra.mxu0 0.0
        %1014 = vmatprep.subr.mxu0 0.0
        %1015 = vmatpush1.msra.mxu0 0.0
        %1016 = vmatprep.subr.mxu0 0.0
        %1017 = vmatpush1.msra.mxu0 0.0
        %1018 = vmatprep.subr.mxu0 0.0
        %1019 = vmatpush1.msra.mxu0 0.0
        %1020 = vmatprep.subr.mxu0 0.0
        %1021 = vmatpush1.msra.mxu0 0.0
        %1022 = vmatprep.subr.mxu0 0.0
        %1023 = vmatpush1.msra.mxu0 0.0
        %1024 = vmatprep.subr.mxu0 0.0
        %1025 = vmatpush1.msra.mxu0 0.0
        %1026 = vmatprep.subr.mxu0 0.0
        %1027 = vmatpush1.msra.mxu0 0.0
        %1028 = vmatprep.subr.mxu0 0.0
        %1029 = vmatpush1.msra.mxu0 0.0
        %1030 = vmatprep.subr.mxu0 0.0
        %1031 = vmatpush1.msra.mxu0 0.0
        %1032 = vmatprep.subr.mxu0 0.0
        %1033 = vmatpush1.msra.mxu0 0.0
        %1034 = vmatprep.subr.mxu0 0.0
        %1035 = vmatpush1.msra.mxu0 0.0
        %1036 = vmatprep.subr.mxu0 0.0
        %1037 = vmatpush1.msra.mxu0 0.0
        %1038 = vmatprep.subr.mxu0 0.0
        %1039 = vmatpush1.msra.mxu0 0.0
        %1040 = vmatprep.mubr.f32.mxu0 0.0
        %1041 = vmatmul.mubr.f32.gmra.mrb[0].mxu0 %v965
        %v1042 = vpop.f32.mrb[0].mxu0
        %v1043 = vadd.f32 0.0, %v1042
        %v1044 = vpop.f32.mrb[0].mxu0
        %v1045 = vadd.f32 0.0, %v1044
        %1046 = vmatprep.mubr.f32.mxu0 0.0
        %1047 = vmatmul.mubr.f32.gmra.mrb[0].mxu0 %v968
        %v1048 = vpop.f32.mrb[0].mxu0
        %v1049 = vadd.f32 0.0, %v1048
        %v1050 = vpop.f32.mrb[0].mxu0
        %v1051 = vadd.f32 0.0, %v1050
        %1052 = vmatprep.mubr.f32.mxu0 0.0
        %1053 = vmatmul.mubr.f32.gmra.mrb[0].mxu0 %v971
        %v1054 = vpop.f32.mrb[0].mxu0
        %v1055 = vadd.f32 0.0, %v1054
        %v1056 = vpop.f32.mrb[0].mxu0
        %v1057 = vadd.f32 0.0, %v1056
        %1058 = vmatprep.mubr.f32.mxu0 0.0
        %1059 = vmatmul.mubr.f32.gmra.mrb[0].mxu0 %v974
        %v1060 = vpop.f32.mrb[0].mxu0
        %v1061 = vadd.f32 0.0, %v1060
        %v1062 = vpop.f32.mrb[0].mxu0
        %v1063 = vadd.f32 0.0, %v1062
        %1064 = vdwg.mxu0
        %v1065 = vadd.f32 %v927, %v1043
        %v1066 = vadd.f32 %v928, %v1045
        %v1067 = vadd.f32 %v929, %v1049
        %v1068 = vadd.f32 %v930, %v1051
        %v1069 = vadd.f32 %v931, %v1055
        %v1070 = vadd.f32 %v932, %v1057
        %v1071 = vadd.f32 %v933, %v1061
        %v1072 = vadd.f32 %v934, %v1063
        %v1073 = vmax.f32 %v1065, %v1066
        %v1074 = vmax.f32 %v1067, %v1068
        %v1075 = vmax.f32 %v1069, %v1070
        %v1076 = vmax.f32 %v1071, %v1072
        %v1077 = vld [vmem:[%s2] sm:$0x1]
        %v1079 = vlaneseq
        %v1080 = vshrl.u32 %v1079, 7
        %v1081 = vsub.s32 0, %v1080
        %v1082 = vrot.slane %v1077, %v1081
        %v1084 = vadd.f32 %v1073, %v1082
        %v1085 = vadd.f32 %v1074, %v1082
        %v1086 = vadd.f32 %v1075, %v1082
        %v1087 = vadd.f32 %v1076, %v1082
        %v1088 = vmax.f32 %v1084, 0.0
        %v1089 = vmax.f32 %v1085, 0.0
        %v1090 = vmax.f32 %v1086, 0.0
        %v1091 = vmax.f32 %v1087, 0.0
        %1092 = vst [vmem:[#allocation2] sm:$0xff] %v1088
        %1093 = vst [vmem:[#allocation2 + $0x8] sm:$0xff] %v1089
        %1094 = vst [vmem:[#allocation2 + $0x10] sm:$0xff] %v1090
        %1095 = vst [vmem:[#allocation2 + $0x18] sm:$0xf] %v1091
        %v1096 = vld [vmem:[#allocation2] ss:$2 sm:$0xff]
        %s1097 = scalar_lea.vmem [#allocation2], 16
        %v1098 = vld [vmem:[%s1097] ss:$2 sm:$0x3f]
        %s1099 = scalar_lea.vmem [#allocation2], 1
        %v1100 = vld [vmem:[%s1099] ss:$2 sm:$0xff]
        %s1101 = scalar_lea.vmem [#allocation2], 17
        %v1102 = vld [vmem:[%s1101] ss:$2 sm:$0x3f]
        %v1103 = vmax.f32 %v1096, %v1100
        %v1104 = vmax.f32 %v1098, %v1102
        %v1105 = vld [vmem:[%s3] sm:$0xff]
        %v1106 = vld [vmem:[%s3 + $0x8] sm:$0xff]
        %v1107 = vld [vmem:[%s3 + $0x10] sm:$0xff]
        %v1108 = vld [vmem:[%s3 + $0x18] sm:$0xff]
        %v1109 = vld [vmem:[%s3 + $0x20] sm:$0xff]
        %v1110 = vld [vmem:[%s3 + $0x28] sm:$0xff]
        %v1111 = vld [vmem:[%s3 + $0x30] sm:$0xff]
        %v1112 = vld [vmem:[%s3 + $0x38] sm:$0xff]
        %v1113 = vld [vmem:[%s3 + $0x40] sm:$0xff]
        %v1114 = vld [vmem:[%s3 + $0x48] sm:$0xff]
        %v1115 = vld [vmem:[%s3 + $0x50] sm:$0xff]
        %v1116 = vld [vmem:[%s3 + $0x58] sm:$0xff]
        %v1117 = vld [vmem:[%s3 + $0x60] sm:$0xff]
        %v1118 = vld [vmem:[%s3 + $0x68] sm:$0xff]
        %v1119 = vld [vmem:[%s3 + $0x70] sm:$0xff]
        %v1120 = vld [vmem:[%s3 + $0x78] sm:$0xff]
        %v1121 = vld [vmem:[%s3 + $0x80] sm:$0xff]
        %v1122 = vld [vmem:[%s3 + $0x88] sm:$0xff]
        %v1123 = vld [vmem:[%s3 + $0x90] sm:$0xff]
        %v1124 = vld [vmem:[%s3 + $0x98] sm:$0xff]
        %v1125 = vld [vmem:[%s3 + $0xa0] sm:$0xff]
        %v1126 = vld [vmem:[%s3 + $0xa8] sm:$0xff]
        %v1127 = vld [vmem:[%s3 + $0xb0] sm:$0xff]
        %v1128 = vld [vmem:[%s3 + $0xb8] sm:$0xff]
        %v1129 = vld [vmem:[%s3 + $0xc0] sm:$0xff]
        %v1130 = vld [vmem:[%s3 + $0xc8] sm:$0xff]
        %v1131 = vld [vmem:[%s3 + $0xd0] sm:$0xff]
        %v1132 = vld [vmem:[%s3 + $0xd8] sm:$0xff]
        %v1133 = vld [vmem:[%s3 + $0xe0] sm:$0xff]
        %v1134 = vld [vmem:[%s3 + $0xe8] sm:$0xff]
        %v1135 = vld [vmem:[%s3 + $0xf0] sm:$0xff]
        %v1136 = vld [vmem:[%s3 + $0xf8] sm:$0xff]
        %s1137 = scalar_lea.vmem %s3, 256
        %v1138 = vld [vmem:[%s1137] sm:$0xff]
        %v1139 = vld [vmem:[%s1137 + $0x8] sm:$0xff]
        %v1140 = vld [vmem:[%s1137 + $0x10] sm:$0xff]
        %v1141 = vld [vmem:[%s1137 + $0x18] sm:$0xff]
        %v1142 = vld [vmem:[%s1137 + $0x20] sm:$0xff]
        %v1143 = vld [vmem:[%s1137 + $0x28] sm:$0xff]
        %v1144 = vld [vmem:[%s1137 + $0x30] sm:$0xff]
        %v1145 = vld [vmem:[%s1137 + $0x38] sm:$0xff]
        %v1146 = vld [vmem:[%s1137 + $0x40] sm:$0xff]
        %v1147 = vld [vmem:[%s1137 + $0x48] sm:$0xff]
        %v1148 = vld [vmem:[%s1137 + $0x50] sm:$0xff]
        %v1149 = vld [vmem:[%s1137 + $0x58] sm:$0xff]
        %v1150 = vld [vmem:[%s1137 + $0x60] sm:$0xff]
        %v1151 = vld [vmem:[%s1137 + $0x68] sm:$0xff]
        %v1152 = vld [vmem:[%s1137 + $0x70] sm:$0xff]
        %v1153 = vld [vmem:[%s1137 + $0x78] sm:$0xff]
        %v1154 = vld [vmem:[%s1137 + $0x80] sm:$0xff]
        %v1155 = vld [vmem:[%s1137 + $0x88] sm:$0xff]
        %v1156 = vld [vmem:[%s1137 + $0x90] sm:$0xff]
        %v1157 = vld [vmem:[%s1137 + $0x98] sm:$0xff]
        %v1158 = vld [vmem:[%s1137 + $0xa0] sm:$0xff]
        %v1159 = vld [vmem:[%s1137 + $0xa8] sm:$0xff]
        %v1160 = vld [vmem:[%s1137 + $0xb0] sm:$0xff]
        %v1161 = vld [vmem:[%s1137 + $0xb8] sm:$0xff]
        %v1162 = vld [vmem:[%s1137 + $0xc0] sm:$0xff]
        %v1163 = vld [vmem:[%s1137 + $0xc8] sm:$0xff]
        %v1164 = vld [vmem:[%s1137 + $0xd0] sm:$0xff]
        %v1165 = vld [vmem:[%s1137 + $0xd8] sm:$0xff]
        %v1166 = vld [vmem:[%s1137 + $0xe0] sm:$0xff]
        %v1167 = vld [vmem:[%s1137 + $0xe8] sm:$0xff]
        %v1168 = vld [vmem:[%s1137 + $0xf0] sm:$0xff]
        %v1169 = vld [vmem:[%s1137 + $0xf8] sm:$0xff]
        %vm1172 = vcmask 1046528
        %v1173 = vrot.slane %v1103, 1
        %v1174 = vrot.slane %v1104, 1
        %v1175 = vsel %vm1172, %v1173, %v1174
        %1178 = vmatprep.subr.mxu0 %v1139
        %1179 = vmatpush1.msra.mxu0 %v1138
        %1180 = vmatprep.subr.mxu0 %v1141
        %1181 = vmatpush1.msra.mxu0 %v1140
        %1182 = vmatprep.subr.mxu0 %v1143
        %1183 = vmatpush1.msra.mxu0 %v1142
        %1184 = vmatprep.subr.mxu0 %v1145
        %1185 = vmatpush1.msra.mxu0 %v1144
        %1186 = vmatprep.subr.mxu0 %v1147
        %1187 = vmatpush1.msra.mxu0 %v1146
        %1188 = vmatprep.subr.mxu0 %v1149
        %1189 = vmatpush1.msra.mxu0 %v1148
        %1190 = vmatprep.subr.mxu0 %v1151
        %1191 = vmatpush1.msra.mxu0 %v1150
        %1192 = vmatprep.subr.mxu0 %v1153
        %1193 = vmatpush1.msra.mxu0 %v1152
        %1194 = vmatprep.subr.mxu0 %v1155
        %1195 = vmatpush1.msra.mxu0 %v1154
        %1196 = vmatprep.subr.mxu0 %v1157
        %1197 = vmatpush1.msra.mxu0 %v1156
        %1198 = vmatprep.subr.mxu0 %v1159
        %1199 = vmatpush1.msra.mxu0 %v1158
        %1200 = vmatprep.subr.mxu0 %v1161
        %1201 = vmatpush1.msra.mxu0 %v1160
        %1202 = vmatprep.subr.mxu0 %v1163
        %1203 = vmatpush1.msra.mxu0 %v1162
        %1204 = vmatprep.subr.mxu0 %v1165
        %1205 = vmatpush1.msra.mxu0 %v1164
        %1206 = vmatprep.subr.mxu0 %v1167
        %1207 = vmatpush1.msra.mxu0 %v1166
        %1208 = vmatprep.subr.mxu0 %v1169
        %1209 = vmatpush1.msra.mxu0 %v1168
        %1210 = vmatprep.subr.mxu0 0.0
        %1211 = vmatpush1.msra.mxu0 0.0
        %1212 = vmatprep.subr.mxu0 0.0
        %1213 = vmatpush1.msra.mxu0 0.0
        %1214 = vmatprep.subr.mxu0 0.0
        %1215 = vmatpush1.msra.mxu0 0.0
        %1216 = vmatprep.subr.mxu0 0.0
        %1217 = vmatpush1.msra.mxu0 0.0
        %1218 = vmatprep.subr.mxu0 0.0
        %1219 = vmatpush1.msra.mxu0 0.0
        %1220 = vmatprep.subr.mxu0 0.0
        %1221 = vmatpush1.msra.mxu0 0.0
        %1222 = vmatprep.subr.mxu0 0.0
        %1223 = vmatpush1.msra.mxu0 0.0
        %1224 = vmatprep.subr.mxu0 0.0
        %1225 = vmatpush1.msra.mxu0 0.0
        %1226 = vmatprep.subr.mxu0 0.0
        %1227 = vmatpush1.msra.mxu0 0.0
        %1228 = vmatprep.subr.mxu0 0.0
        %1229 = vmatpush1.msra.mxu0 0.0
        %1230 = vmatprep.subr.mxu0 0.0
        %1231 = vmatpush1.msra.mxu0 0.0
        %1232 = vmatprep.subr.mxu0 0.0
        %1233 = vmatpush1.msra.mxu0 0.0
        %1234 = vmatprep.subr.mxu0 0.0
        %1235 = vmatpush1.msra.mxu0 0.0
        %1236 = vmatprep.subr.mxu0 0.0
        %1237 = vmatpush1.msra.mxu0 0.0
        %1238 = vmatprep.subr.mxu0 0.0
        %1239 = vmatpush1.msra.mxu0 0.0
        %1240 = vmatprep.subr.mxu0 0.0
        %1241 = vmatpush1.msra.mxu0 0.0
        %1242 = vmatprep.mubr.f32.mxu0 0.0
        %1243 = vmatmul.mubr.f32.gmra.mrb[0].mxu0 %v1175
        %v1244 = vpop.f32.mrb[0].mxu0
        %v1245 = vadd.f32 0.0, %v1244
        %v1246 = vpop.f32.mrb[0].mxu0
        %v1247 = vadd.f32 0.0, %v1246
        %1248 = vmatprep.mubr.f32.mxu0 0.0
        %1249 = vmatmul.mubr.f32.gmra.mrb[0].mxu0 %v1174
        %v1250 = vpop.f32.mrb[0].mxu0
        %v1251 = vadd.f32 0.0, %v1250
        %v1252 = vpop.f32.mrb[0].mxu0
        %v1253 = vadd.f32 0.0, %v1252
        %1254 = vdwg.mxu0
        %1255 = vmatprep.subr.mxu0 %v1106
        %1256 = vmatpush1.msra.mxu0 %v1105
        %1257 = vmatprep.subr.mxu0 %v1108
        %1258 = vmatpush1.msra.mxu0 %v1107
        %1259 = vmatprep.subr.mxu0 %v1110
        %1260 = vmatpush1.msra.mxu0 %v1109
        %1261 = vmatprep.subr.mxu0 %v1112
        %1262 = vmatpush1.msra.mxu0 %v1111
        %1263 = vmatprep.subr.mxu0 %v1114
        %1264 = vmatpush1.msra.mxu0 %v1113
        %1265 = vmatprep.subr.mxu0 %v1116
        %1266 = vmatpush1.msra.mxu0 %v1115
        %1267 = vmatprep.subr.mxu0 %v1118
        %1268 = vmatpush1.msra.mxu0 %v1117
        %1269 = vmatprep.subr.mxu0 %v1120
        %1270 = vmatpush1.msra.mxu0 %v1119
        %1271 = vmatprep.subr.mxu0 %v1122
        %1272 = vmatpush1.msra.mxu0 %v1121
        %1273 = vmatprep.subr.mxu0 %v1124
        %1274 = vmatpush1.msra.mxu0 %v1123
        %1275 = vmatprep.subr.mxu0 %v1126
        %1276 = vmatpush1.msra.mxu0 %v1125
        %1277 = vmatprep.subr.mxu0 %v1128
        %1278 = vmatpush1.msra.mxu0 %v1127
        %1279 = vmatprep.subr.mxu0 %v1130
        %1280 = vmatpush1.msra.mxu0 %v1129
        %1281 = vmatprep.subr.mxu0 %v1132
        %1282 = vmatpush1.msra.mxu0 %v1131
        %1283 = vmatprep.subr.mxu0 %v1134
        %1284 = vmatpush1.msra.mxu0 %v1133
        %1285 = vmatprep.subr.mxu0 %v1136
        %1286 = vmatpush1.msra.mxu0 %v1135
        %1287 = vmatprep.subr.mxu0 0.0
        %1288 = vmatpush1.msra.mxu0 0.0
        %1289 = vmatprep.subr.mxu0 0.0
        %1290 = vmatpush1.msra.mxu0 0.0
        %1291 = vmatprep.subr.mxu0 0.0
        %1292 = vmatpush1.msra.mxu0 0.0
        %1293 = vmatprep.subr.mxu0 0.0
        %1294 = vmatpush1.msra.mxu0 0.0
        %1295 = vmatprep.subr.mxu0 0.0
        %1296 = vmatpush1.msra.mxu0 0.0
        %1297 = vmatprep.subr.mxu0 0.0
        %1298 = vmatpush1.msra.mxu0 0.0
        %1299 = vmatprep.subr.mxu0 0.0
        %1300 = vmatpush1.msra.mxu0 0.0
        %1301 = vmatprep.subr.mxu0 0.0
        %1302 = vmatpush1.msra.mxu0 0.0
        %1303 = vmatprep.subr.mxu0 0.0
        %1304 = vmatpush1.msra.mxu0 0.0
        %1305 = vmatprep.subr.mxu0 0.0
        %1306 = vmatpush1.msra.mxu0 0.0
        %1307 = vmatprep.subr.mxu0 0.0
        %1308 = vmatpush1.msra.mxu0 0.0
        %1309 = vmatprep.subr.mxu0 0.0
        %1310 = vmatpush1.msra.mxu0 0.0
        %1311 = vmatprep.subr.mxu0 0.0
        %1312 = vmatpush1.msra.mxu0 0.0
        %1313 = vmatprep.subr.mxu0 0.0
        %1314 = vmatpush1.msra.mxu0 0.0
        %1315 = vmatprep.subr.mxu0 0.0
        %1316 = vmatpush1.msra.mxu0 0.0
        %1317 = vmatprep.subr.mxu0 0.0
        %1318 = vmatpush1.msra.mxu0 0.0
        %1319 = vmatprep.mubr.f32.mxu0 0.0
        %1320 = vmatmul.mubr.f32.gmra.mrb[0].mxu0 %v1103
        %v1321 = vpop.f32.mrb[0].mxu0
        %v1322 = vadd.f32 %v1245, %v1321
        %v1323 = vpop.f32.mrb[0].mxu0
        %v1324 = vadd.f32 %v1247, %v1323
        %1325 = vmatprep.mubr.f32.mxu0 0.0
        %1326 = vmatmul.mubr.f32.gmra.mrb[0].mxu0 %v1104
        %v1327 = vpop.f32.mrb[0].mxu0
        %v1328 = vadd.f32 %v1251, %v1327
        %v1329 = vpop.f32.mrb[0].mxu0
        %v1330 = vadd.f32 %v1253, %v1329
        %1331 = vdwg.mxu0
        %s1332 = scalar_lea.vmem %s3, 512
        %v1333 = vld [vmem:[%s1332] sm:$0xff]
        %v1334 = vld [vmem:[%s1332 + $0x8] sm:$0xff]
        %v1335 = vld [vmem:[%s1332 + $0x10] sm:$0xff]
        %v1336 = vld [vmem:[%s1332 + $0x18] sm:$0xff]
        %v1337 = vld [vmem:[%s1332 + $0x20] sm:$0xff]
        %v1338 = vld [vmem:[%s1332 + $0x28] sm:$0xff]
        %v1339 = vld [vmem:[%s1332 + $0x30] sm:$0xff]
        %v1340 = vld [vmem:[%s1332 + $0x38] sm:$0xff]
        %v1341 = vld [vmem:[%s1332 + $0x40] sm:$0xff]
        %v1342 = vld [vmem:[%s1332 + $0x48] sm:$0xff]
        %v1343 = vld [vmem:[%s1332 + $0x50] sm:$0xff]
        %v1344 = vld [vmem:[%s1332 + $0x58] sm:$0xff]
        %v1345 = vld [vmem:[%s1332 + $0x60] sm:$0xff]
        %v1346 = vld [vmem:[%s1332 + $0x68] sm:$0xff]
        %v1347 = vld [vmem:[%s1332 + $0x70] sm:$0xff]
        %v1348 = vld [vmem:[%s1332 + $0x78] sm:$0xff]
        %v1349 = vld [vmem:[%s1332 + $0x80] sm:$0xff]
        %v1350 = vld [vmem:[%s1332 + $0x88] sm:$0xff]
        %v1351 = vld [vmem:[%s1332 + $0x90] sm:$0xff]
        %v1352 = vld [vmem:[%s1332 + $0x98] sm:$0xff]
        %v1353 = vld [vmem:[%s1332 + $0xa0] sm:$0xff]
        %v1354 = vld [vmem:[%s1332 + $0xa8] sm:$0xff]
        %v1355 = vld [vmem:[%s1332 + $0xb0] sm:$0xff]
        %v1356 = vld [vmem:[%s1332 + $0xb8] sm:$0xff]
        %v1357 = vld [vmem:[%s1332 + $0xc0] sm:$0xff]
        %v1358 = vld [vmem:[%s1332 + $0xc8] sm:$0xff]
        %v1359 = vld [vmem:[%s1332 + $0xd0] sm:$0xff]
        %v1360 = vld [vmem:[%s1332 + $0xd8] sm:$0xff]
        %v1361 = vld [vmem:[%s1332 + $0xe0] sm:$0xff]
        %v1362 = vld [vmem:[%s1332 + $0xe8] sm:$0xff]
        %v1363 = vld [vmem:[%s1332 + $0xf0] sm:$0xff]
        %v1364 = vld [vmem:[%s1332 + $0xf8] sm:$0xff]
        %vm1365 = vcmask 1045504
        %v1366 = vrot.slane %v1103, 2
        %v1367 = vrot.slane %v1104, 2
        %v1368 = vsel %vm1365, %v1366, %v1367
        %1371 = vmatprep.subr.mxu0 %v1334
        %1372 = vmatpush1.msra.mxu0 %v1333
        %1373 = vmatprep.subr.mxu0 %v1336
        %1374 = vmatpush1.msra.mxu0 %v1335
        %1375 = vmatprep.subr.mxu0 %v1338
        %1376 = vmatpush1.msra.mxu0 %v1337
        %1377 = vmatprep.subr.mxu0 %v1340
        %1378 = vmatpush1.msra.mxu0 %v1339
        %1379 = vmatprep.subr.mxu0 %v1342
        %1380 = vmatpush1.msra.mxu0 %v1341
        %1381 = vmatprep.subr.mxu0 %v1344
        %1382 = vmatpush1.msra.mxu0 %v1343
        %1383 = vmatprep.subr.mxu0 %v1346
        %1384 = vmatpush1.msra.mxu0 %v1345
        %1385 = vmatprep.subr.mxu0 %v1348
        %1386 = vmatpush1.msra.mxu0 %v1347
        %1387 = vmatprep.subr.mxu0 %v1350
        %1388 = vmatpush1.msra.mxu0 %v1349
        %1389 = vmatprep.subr.mxu0 %v1352
        %1390 = vmatpush1.msra.mxu0 %v1351
        %1391 = vmatprep.subr.mxu0 %v1354
        %1392 = vmatpush1.msra.mxu0 %v1353
        %1393 = vmatprep.subr.mxu0 %v1356
        %1394 = vmatpush1.msra.mxu0 %v1355
        %1395 = vmatprep.subr.mxu0 %v1358
        %1396 = vmatpush1.msra.mxu0 %v1357
        %1397 = vmatprep.subr.mxu0 %v1360
        %1398 = vmatpush1.msra.mxu0 %v1359
        %1399 = vmatprep.subr.mxu0 %v1362
        %1400 = vmatpush1.msra.mxu0 %v1361
        %1401 = vmatprep.subr.mxu0 %v1364
        %1402 = vmatpush1.msra.mxu0 %v1363
        %1403 = vmatprep.subr.mxu0 0.0
        %1404 = vmatpush1.msra.mxu0 0.0
        %1405 = vmatprep.subr.mxu0 0.0
        %1406 = vmatpush1.msra.mxu0 0.0
        %1407 = vmatprep.subr.mxu0 0.0
        %1408 = vmatpush1.msra.mxu0 0.0
        %1409 = vmatprep.subr.mxu0 0.0
        %1410 = vmatpush1.msra.mxu0 0.0
        %1411 = vmatprep.subr.mxu0 0.0
        %1412 = vmatpush1.msra.mxu0 0.0
        %1413 = vmatprep.subr.mxu0 0.0
        %1414 = vmatpush1.msra.mxu0 0.0
        %1415 = vmatprep.subr.mxu0 0.0
        %1416 = vmatpush1.msra.mxu0 0.0
        %1417 = vmatprep.subr.mxu0 0.0
        %1418 = vmatpush1.msra.mxu0 0.0
        %1419 = vmatprep.subr.mxu0 0.0
        %1420 = vmatpush1.msra.mxu0 0.0
        %1421 = vmatprep.subr.mxu0 0.0
        %1422 = vmatpush1.msra.mxu0 0.0
        %1423 = vmatprep.subr.mxu0 0.0
        %1424 = vmatpush1.msra.mxu0 0.0
        %1425 = vmatprep.subr.mxu0 0.0
        %1426 = vmatpush1.msra.mxu0 0.0
        %1427 = vmatprep.subr.mxu0 0.0
        %1428 = vmatpush1.msra.mxu0 0.0
        %1429 = vmatprep.subr.mxu0 0.0
        %1430 = vmatpush1.msra.mxu0 0.0
        %1431 = vmatprep.subr.mxu0 0.0
        %1432 = vmatpush1.msra.mxu0 0.0
        %1433 = vmatprep.subr.mxu0 0.0
        %1434 = vmatpush1.msra.mxu0 0.0
        %1435 = vmatprep.mubr.f32.mxu0 0.0
        %1436 = vmatmul.mubr.f32.gmra.mrb[0].mxu0 %v1368
        %v1437 = vpop.f32.mrb[0].mxu0
        %v1438 = vadd.f32 0.0, %v1437
        %v1439 = vpop.f32.mrb[0].mxu0
        %v1440 = vadd.f32 0.0, %v1439
        %1441 = vmatprep.mubr.f32.mxu0 0.0
        %1442 = vmatmul.mubr.f32.gmra.mrb[0].mxu0 %v1367
        %v1443 = vpop.f32.mrb[0].mxu0
        %v1444 = vadd.f32 0.0, %v1443
        %v1445 = vpop.f32.mrb[0].mxu0
        %v1446 = vadd.f32 0.0, %v1445
        %1447 = vdwg.mxu0
        %v1448 = vadd.f32 %v1322, %v1438
        %v1449 = vadd.f32 %v1324, %v1440
        %v1450 = vadd.f32 %v1328, %v1444
        %v1451 = vadd.f32 %v1330, %v1446
        %s1452 = scalar_lea.vmem %s3, 768
        %v1453 = vld [vmem:[%s1452] sm:$0xff]
        %v1454 = vld [vmem:[%s1452 + $0x8] sm:$0xff]
        %v1455 = vld [vmem:[%s1452 + $0x10] sm:$0xff]
        %v1456 = vld [vmem:[%s1452 + $0x18] sm:$0xff]
        %v1457 = vld [vmem:[%s1452 + $0x20] sm:$0xff]
        %v1458 = vld [vmem:[%s1452 + $0x28] sm:$0xff]
        %v1459 = vld [vmem:[%s1452 + $0x30] sm:$0xff]
        %v1460 = vld [vmem:[%s1452 + $0x38] sm:$0xff]
        %v1461 = vld [vmem:[%s1452 + $0x40] sm:$0xff]
        %v1462 = vld [vmem:[%s1452 + $0x48] sm:$0xff]
        %v1463 = vld [vmem:[%s1452 + $0x50] sm:$0xff]
        %v1464 = vld [vmem:[%s1452 + $0x58] sm:$0xff]
        %v1465 = vld [vmem:[%s1452 + $0x60] sm:$0xff]
        %v1466 = vld [vmem:[%s1452 + $0x68] sm:$0xff]
        %v1467 = vld [vmem:[%s1452 + $0x70] sm:$0xff]
        %v1468 = vld [vmem:[%s1452 + $0x78] sm:$0xff]
        %v1469 = vld [vmem:[%s1452 + $0x80] sm:$0xff]
        %v1470 = vld [vmem:[%s1452 + $0x88] sm:$0xff]
        %v1471 = vld [vmem:[%s1452 + $0x90] sm:$0xff]
        %v1472 = vld [vmem:[%s1452 + $0x98] sm:$0xff]
        %v1473 = vld [vmem:[%s1452 + $0xa0] sm:$0xff]
        %v1474 = vld [vmem:[%s1452 + $0xa8] sm:$0xff]
        %v1475 = vld [vmem:[%s1452 + $0xb0] sm:$0xff]
        %v1476 = vld [vmem:[%s1452 + $0xb8] sm:$0xff]
        %v1477 = vld [vmem:[%s1452 + $0xc0] sm:$0xff]
        %v1478 = vld [vmem:[%s1452 + $0xc8] sm:$0xff]
        %v1479 = vld [vmem:[%s1452 + $0xd0] sm:$0xff]
        %v1480 = vld [vmem:[%s1452 + $0xd8] sm:$0xff]
        %v1481 = vld [vmem:[%s1452 + $0xe0] sm:$0xff]
        %v1482 = vld [vmem:[%s1452 + $0xe8] sm:$0xff]
        %v1483 = vld [vmem:[%s1452 + $0xf0] sm:$0xff]
        %v1484 = vld [vmem:[%s1452 + $0xf8] sm:$0xff]
        %vm1485 = vcmask 1044480
        %v1486 = vrot.slane %v1103, 3
        %v1487 = vrot.slane %v1104, 3
        %v1488 = vsel %vm1485, %v1486, %v1487
        %1491 = vmatprep.subr.mxu0 %v1454
        %1492 = vmatpush1.msra.mxu0 %v1453
        %1493 = vmatprep.subr.mxu0 %v1456
        %1494 = vmatpush1.msra.mxu0 %v1455
        %1495 = vmatprep.subr.mxu0 %v1458
        %1496 = vmatpush1.msra.mxu0 %v1457
        %1497 = vmatprep.subr.mxu0 %v1460
        %1498 = vmatpush1.msra.mxu0 %v1459
        %1499 = vmatprep.subr.mxu0 %v1462
        %1500 = vmatpush1.msra.mxu0 %v1461
        %1501 = vmatprep.subr.mxu0 %v1464
        %1502 = vmatpush1.msra.mxu0 %v1463
        %1503 = vmatprep.subr.mxu0 %v1466
        %1504 = vmatpush1.msra.mxu0 %v1465
        %1505 = vmatprep.subr.mxu0 %v1468
        %1506 = vmatpush1.msra.mxu0 %v1467
        %1507 = vmatprep.subr.mxu0 %v1470
        %1508 = vmatpush1.msra.mxu0 %v1469
        %1509 = vmatprep.subr.mxu0 %v1472
        %1510 = vmatpush1.msra.mxu0 %v1471
        %1511 = vmatprep.subr.mxu0 %v1474
        %1512 = vmatpush1.msra.mxu0 %v1473
        %1513 = vmatprep.subr.mxu0 %v1476
        %1514 = vmatpush1.msra.mxu0 %v1475
        %1515 = vmatprep.subr.mxu0 %v1478
        %1516 = vmatpush1.msra.mxu0 %v1477
        %1517 = vmatprep.subr.mxu0 %v1480
        %1518 = vmatpush1.msra.mxu0 %v1479
        %1519 = vmatprep.subr.mxu0 %v1482
        %1520 = vmatpush1.msra.mxu0 %v1481
        %1521 = vmatprep.subr.mxu0 %v1484
        %1522 = vmatpush1.msra.mxu0 %v1483
        %1523 = vmatprep.subr.mxu0 0.0
        %1524 = vmatpush1.msra.mxu0 0.0
        %1525 = vmatprep.subr.mxu0 0.0
        %1526 = vmatpush1.msra.mxu0 0.0
        %1527 = vmatprep.subr.mxu0 0.0
        %1528 = vmatpush1.msra.mxu0 0.0
        %1529 = vmatprep.subr.mxu0 0.0
        %1530 = vmatpush1.msra.mxu0 0.0
        %1531 = vmatprep.subr.mxu0 0.0
        %1532 = vmatpush1.msra.mxu0 0.0
        %1533 = vmatprep.subr.mxu0 0.0
        %1534 = vmatpush1.msra.mxu0 0.0
        %1535 = vmatprep.subr.mxu0 0.0
        %1536 = vmatpush1.msra.mxu0 0.0
        %1537 = vmatprep.subr.mxu0 0.0
        %1538 = vmatpush1.msra.mxu0 0.0
        %1539 = vmatprep.subr.mxu0 0.0
        %1540 = vmatpush1.msra.mxu0 0.0
        %1541 = vmatprep.subr.mxu0 0.0
        %1542 = vmatpush1.msra.mxu0 0.0
        %1543 = vmatprep.subr.mxu0 0.0
        %1544 = vmatpush1.msra.mxu0 0.0
        %1545 = vmatprep.subr.mxu0 0.0
        %1546 = vmatpush1.msra.mxu0 0.0
        %1547 = vmatprep.subr.mxu0 0.0
        %1548 = vmatpush1.msra.mxu0 0.0
        %1549 = vmatprep.subr.mxu0 0.0
        %1550 = vmatpush1.msra.mxu0 0.0
        %1551 = vmatprep.subr.mxu0 0.0
        %1552 = vmatpush1.msra.mxu0 0.0
        %1553 = vmatprep.subr.mxu0 0.0
        %1554 = vmatpush1.msra.mxu0 0.0
        %1555 = vmatprep.mubr.f32.mxu0 0.0
        %1556 = vmatmul.mubr.f32.gmra.mrb[0].mxu0 %v1488
        %v1557 = vpop.f32.mrb[0].mxu0
        %v1558 = vadd.f32 0.0, %v1557
        %v1559 = vpop.f32.mrb[0].mxu0
        %v1560 = vadd.f32 0.0, %v1559
        %1561 = vmatprep.mubr.f32.mxu0 0.0
        %1562 = vmatmul.mubr.f32.gmra.mrb[0].mxu0 %v1487
        %v1563 = vpop.f32.mrb[0].mxu0
        %v1564 = vadd.f32 0.0, %v1563
        %v1565 = vpop.f32.mrb[0].mxu0
        %v1566 = vadd.f32 0.0, %v1565
        %1567 = vdwg.mxu0
        %v1568 = vadd.f32 %v1448, %v1558
        %v1569 = vadd.f32 %v1449, %v1560
        %v1570 = vadd.f32 %v1450, %v1564
        %v1571 = vadd.f32 %v1451, %v1566
        %s1572 = scalar_lea.vmem %s3, 1024
        %v1573 = vld [vmem:[%s1572] sm:$0xff]
        %v1574 = vld [vmem:[%s1572 + $0x8] sm:$0xff]
        %v1575 = vld [vmem:[%s1572 + $0x10] sm:$0xff]
        %v1576 = vld [vmem:[%s1572 + $0x18] sm:$0xff]
        %v1577 = vld [vmem:[%s1572 + $0x20] sm:$0xff]
        %v1578 = vld [vmem:[%s1572 + $0x28] sm:$0xff]
        %v1579 = vld [vmem:[%s1572 + $0x30] sm:$0xff]
        %v1580 = vld [vmem:[%s1572 + $0x38] sm:$0xff]
        %v1581 = vld [vmem:[%s1572 + $0x40] sm:$0xff]
        %v1582 = vld [vmem:[%s1572 + $0x48] sm:$0xff]
        %v1583 = vld [vmem:[%s1572 + $0x50] sm:$0xff]
        %v1584 = vld [vmem:[%s1572 + $0x58] sm:$0xff]
        %v1585 = vld [vmem:[%s1572 + $0x60] sm:$0xff]
        %v1586 = vld [vmem:[%s1572 + $0x68] sm:$0xff]
        %v1587 = vld [vmem:[%s1572 + $0x70] sm:$0xff]
        %v1588 = vld [vmem:[%s1572 + $0x78] sm:$0xff]
        %v1589 = vld [vmem:[%s1572 + $0x80] sm:$0xff]
        %v1590 = vld [vmem:[%s1572 + $0x88] sm:$0xff]
        %v1591 = vld [vmem:[%s1572 + $0x90] sm:$0xff]
        %v1592 = vld [vmem:[%s1572 + $0x98] sm:$0xff]
        %v1593 = vld [vmem:[%s1572 + $0xa0] sm:$0xff]
        %v1594 = vld [vmem:[%s1572 + $0xa8] sm:$0xff]
        %v1595 = vld [vmem:[%s1572 + $0xb0] sm:$0xff]
        %v1596 = vld [vmem:[%s1572 + $0xb8] sm:$0xff]
        %v1597 = vld [vmem:[%s1572 + $0xc0] sm:$0xff]
        %v1598 = vld [vmem:[%s1572 + $0xc8] sm:$0xff]
        %v1599 = vld [vmem:[%s1572 + $0xd0] sm:$0xff]
        %v1600 = vld [vmem:[%s1572 + $0xd8] sm:$0xff]
        %v1601 = vld [vmem:[%s1572 + $0xe0] sm:$0xff]
        %v1602 = vld [vmem:[%s1572 + $0xe8] sm:$0xff]
        %v1603 = vld [vmem:[%s1572 + $0xf0] sm:$0xff]
        %v1604 = vld [vmem:[%s1572 + $0xf8] sm:$0xff]
        %vm1605 = vcmask 1043456
        %v1606 = vrot.slane %v1103, 4
        %v1607 = vrot.slane %v1104, 4
        %v1608 = vsel %vm1605, %v1606, %v1607
        %1611 = vmatprep.subr.mxu0 %v1574
        %1612 = vmatpush1.msra.mxu0 %v1573
        %1613 = vmatprep.subr.mxu0 %v1576
        %1614 = vmatpush1.msra.mxu0 %v1575
        %1615 = vmatprep.subr.mxu0 %v1578
        %1616 = vmatpush1.msra.mxu0 %v1577
        %1617 = vmatprep.subr.mxu0 %v1580
        %1618 = vmatpush1.msra.mxu0 %v1579
        %1619 = vmatprep.subr.mxu0 %v1582
        %1620 = vmatpush1.msra.mxu0 %v1581
        %1621 = vmatprep.subr.mxu0 %v1584
        %1622 = vmatpush1.msra.mxu0 %v1583
        %1623 = vmatprep.subr.mxu0 %v1586
        %1624 = vmatpush1.msra.mxu0 %v1585
        %1625 = vmatprep.subr.mxu0 %v1588
        %1626 = vmatpush1.msra.mxu0 %v1587
        %1627 = vmatprep.subr.mxu0 %v1590
        %1628 = vmatpush1.msra.mxu0 %v1589
        %1629 = vmatprep.subr.mxu0 %v1592
        %1630 = vmatpush1.msra.mxu0 %v1591
        %1631 = vmatprep.subr.mxu0 %v1594
        %1632 = vmatpush1.msra.mxu0 %v1593
        %1633 = vmatprep.subr.mxu0 %v1596
        %1634 = vmatpush1.msra.mxu0 %v1595
        %1635 = vmatprep.subr.mxu0 %v1598
        %1636 = vmatpush1.msra.mxu0 %v1597
        %1637 = vmatprep.subr.mxu0 %v1600
        %1638 = vmatpush1.msra.mxu0 %v1599
        %1639 = vmatprep.subr.mxu0 %v1602
        %1640 = vmatpush1.msra.mxu0 %v1601
        %1641 = vmatprep.subr.mxu0 %v1604
        %1642 = vmatpush1.msra.mxu0 %v1603
        %1643 = vmatprep.subr.mxu0 0.0
        %1644 = vmatpush1.msra.mxu0 0.0
        %1645 = vmatprep.subr.mxu0 0.0
        %1646 = vmatpush1.msra.mxu0 0.0
        %1647 = vmatprep.subr.mxu0 0.0
        %1648 = vmatpush1.msra.mxu0 0.0
        %1649 = vmatprep.subr.mxu0 0.0
        %1650 = vmatpush1.msra.mxu0 0.0
        %1651 = vmatprep.subr.mxu0 0.0
        %1652 = vmatpush1.msra.mxu0 0.0
        %1653 = vmatprep.subr.mxu0 0.0
        %1654 = vmatpush1.msra.mxu0 0.0
        %1655 = vmatprep.subr.mxu0 0.0
        %1656 = vmatpush1.msra.mxu0 0.0
        %1657 = vmatprep.subr.mxu0 0.0
        %1658 = vmatpush1.msra.mxu0 0.0
        %1659 = vmatprep.subr.mxu0 0.0
        %1660 = vmatpush1.msra.mxu0 0.0
        %1661 = vmatprep.subr.mxu0 0.0
        %1662 = vmatpush1.msra.mxu0 0.0
        %1663 = vmatprep.subr.mxu0 0.0
        %1664 = vmatpush1.msra.mxu0 0.0
        %1665 = vmatprep.subr.mxu0 0.0
        %1666 = vmatpush1.msra.mxu0 0.0
        %1667 = vmatprep.subr.mxu0 0.0
        %1668 = vmatpush1.msra.mxu0 0.0
        %1669 = vmatprep.subr.mxu0 0.0
        %1670 = vmatpush1.msra.mxu0 0.0
        %1671 = vmatprep.subr.mxu0 0.0
        %1672 = vmatpush1.msra.mxu0 0.0
        %1673 = vmatprep.subr.mxu0 0.0
        %1674 = vmatpush1.msra.mxu0 0.0
        %1675 = vmatprep.mubr.f32.mxu0 0.0
        %1676 = vmatmul.mubr.f32.gmra.mrb[0].mxu0 %v1608
        %v1677 = vpop.f32.mrb[0].mxu0
        %v1678 = vadd.f32 0.0, %v1677
        %v1679 = vpop.f32.mrb[0].mxu0
        %v1680 = vadd.f32 0.0, %v1679
        %1681 = vmatprep.mubr.f32.mxu0 0.0
        %1682 = vmatmul.mubr.f32.gmra.mrb[0].mxu0 %v1607
        %v1683 = vpop.f32.mrb[0].mxu0
        %v1684 = vadd.f32 0.0, %v1683
        %v1685 = vpop.f32.mrb[0].mxu0
        %v1686 = vadd.f32 0.0, %v1685
        %1687 = vdwg.mxu0
        %v1688 = vadd.f32 %v1568, %v1678
        %v1689 = vadd.f32 %v1569, %v1680
        %v1690 = vadd.f32 %v1570, %v1684
        %v1691 = vadd.f32 %v1571, %v1686
        %v1692 = vmax.f32 %v1688, %v1689
        %v1693 = vmax.f32 %v1690, %v1691
        %v1694 = vld [vmem:[%s4] sm:$0x1]
        %v1696 = vlaneseq
        %v1697 = vshrl.u32 %v1696, 7
        %v1698 = vsub.s32 0, %v1697
        %v1699 = vrot.slane %v1694, %v1698
        %v1701 = vadd.f32 %v1692, %v1699
        %v1702 = vadd.f32 %v1693, %v1699
        %v1703 = vmax.f32 %v1701, 0.0
        %v1704 = vmax.f32 %v1702, 0.0
        %1705 = vst [vmem:[#allocation3] sm:$0xff] %v1703
        %1706 = vst [vmem:[#allocation3 + $0x8] sm:$0x3] %v1704
        %v1707 = vld [vmem:[#allocation3] ss:$2 sm:$0x1f]
        %s1708 = scalar_lea.vmem [#allocation3], 1
        %v1709 = vld [vmem:[%s1708] ss:$2 sm:$0x1f]
        %v1710 = vmax.f32 %v1707, %v1709
        %v1711 = vlaneseq
        %vm1712 = vcmp.ge.s32.totalorder %v1711, 0
        %vm1713 = vcmp.lt.s32.totalorder %v1711, 128
        %vm1714 = vmand %vm1712, %vm1713
        %1715 = vst.msk [vmem:[#allocation4] sm:$0x1] %vm1714, %v1710
        %v1718 = vunpack.c.l.s4 1966171168
        %v1719 = vunpack.c.0.s8 %v1718
        %v1720 = vlaneseq
        %v1721 = vshrl.u32 %v1720, 7
        %v1722 = vsub.s32 %v1719, %v1721
        %v1723 = vrot.slane %v1710, %v1722
        %v1724 = vcombine.high %v1723, %v1723
        %v1726 = vunpack.c.l.s4 1966171168
        %v1727 = vunpack.c.0.s8 %v1726
        %v1728 = vlaneseq
        %v1729 = vshrl.u32 %v1728, 7
        %v1730 = vsub.s32 %v1727, %v1729
        %v1731 = vrot.slane %v1723, %v1730
        %v1733 = vunpack.c.l.s4 1966171168
        %v1734 = vunpack.c.0.s8 %v1733
        %v1735 = vlaneseq
        %v1736 = vshrl.u32 %v1735, 7
        %v1737 = vsub.s32 %v1734, %v1736
        %v1738 = vrot.slane %v1724, %v1737
        %1740 = vst.msk [vmem:[#allocation4 + $0x1] sm:$0x1] %vm1714, %v1738
        %v1741 = vcombine.high %v1731, %v1731
        %1743 = vst.msk [vmem:[#allocation4 + $0x2] sm:$0x1] %vm1714, %v1741
        %v1744 = vcombine.high %v1738, %v1738
        %1746 = vst.msk [vmem:[#allocation4 + $0x3] sm:$0x1] %vm1714, %v1744
        %v1747 = vcombine.high %v1710, %v1710
        %v1749 = vunpack.c.l.s4 1966171168
        %v1750 = vunpack.c.0.s8 %v1749
        %v1751 = vlaneseq
        %v1752 = vshrl.u32 %v1751, 7
        %v1753 = vsub.s32 %v1750, %v1752
        %v1754 = vrot.slane %v1747, %v1753
        %v1756 = vunpack.c.l.s4 1966171168
        %v1757 = vunpack.c.0.s8 %v1756
        %v1758 = vlaneseq
        %v1759 = vshrl.u32 %v1758, 7
        %v1760 = vsub.s32 %v1757, %v1759
        %v1761 = vrot.slane %v1754, %v1760
        %1763 = vst.msk [vmem:[#allocation4 + $0x4] sm:$0x1] %vm1714, %v1761
        %v1764 = vld [vmem:[#allocation4] sm:$0x1f]
        %v1765 = vld [vmem:[%s5] sm:$0xff]
        %v1766 = vld [vmem:[%s5 + $0x8] sm:$0xff]
        %v1767 = vld [vmem:[%s5 + $0x10] sm:$0xff]
        %v1768 = vld [vmem:[%s5 + $0x18] sm:$0xff]
        %v1769 = vld [vmem:[%s5 + $0x20] sm:$0xff]
        %v1770 = vld [vmem:[%s5 + $0x28] sm:$0xff]
        %v1771 = vld [vmem:[%s5 + $0x30] sm:$0xff]
        %v1772 = vld [vmem:[%s5 + $0x38] sm:$0xff]
        %v1773 = vld [vmem:[%s5 + $0x40] sm:$0xff]
        %v1774 = vld [vmem:[%s5 + $0x48] sm:$0xff]
        %v1775 = vld [vmem:[%s5 + $0x50] sm:$0xff]
        %v1776 = vld [vmem:[%s5 + $0x58] sm:$0xff]
        %v1777 = vld [vmem:[%s5 + $0x60] sm:$0xff]
        %v1778 = vld [vmem:[%s5 + $0x68] sm:$0xff]
        %v1779 = vld [vmem:[%s5 + $0x70] sm:$0xff]
        %v1780 = vld [vmem:[%s5 + $0x78] sm:$0xff]
        %v1781 = vld [vmem:[%s5 + $0x80] sm:$0xff]
        %v1782 = vld [vmem:[%s5 + $0x88] sm:$0xff]
        %v1783 = vld [vmem:[%s5 + $0x90] sm:$0xff]
        %v1784 = vld [vmem:[%s5 + $0x98] sm:$0xff]
        %v1785 = vld [vmem:[%s5 + $0xa0] sm:$0xff]
        %v1786 = vld [vmem:[%s5 + $0xa8] sm:$0xff]
        %v1787 = vld [vmem:[%s5 + $0xb0] sm:$0xff]
        %v1788 = vld [vmem:[%s5 + $0xb8] sm:$0xff]
        %v1789 = vld [vmem:[%s5 + $0xc0] sm:$0xff]
        %v1790 = vld [vmem:[%s5 + $0xc8] sm:$0xff]
        %v1791 = vld [vmem:[%s5 + $0xd0] sm:$0xff]
        %v1792 = vld [vmem:[%s5 + $0xd8] sm:$0xff]
        %v1793 = vld [vmem:[%s5 + $0xe0] sm:$0xff]
        %v1794 = vld [vmem:[%s5 + $0xe8] sm:$0xff]
        %v1795 = vld [vmem:[%s5 + $0xf0] sm:$0xff]
        %v1796 = vld [vmem:[%s5 + $0xf8] sm:$0xff]
        %v1797 = vld [vmem:[%s5 + $0x100] sm:$0xff]
        %v1798 = vld [vmem:[%s5 + $0x108] sm:$0xff]
        %v1799 = vld [vmem:[%s5 + $0x110] sm:$0xff]
        %v1800 = vld [vmem:[%s5 + $0x118] sm:$0xff]
        %v1801 = vld [vmem:[%s5 + $0x120] sm:$0xff]
        %v1802 = vld [vmem:[%s5 + $0x128] sm:$0xff]
        %v1803 = vld [vmem:[%s5 + $0x130] sm:$0xff]
        %v1804 = vld [vmem:[%s5 + $0x138] sm:$0xff]
        %v1805 = vld [vmem:[%s5 + $0x140] sm:$0xff]
        %v1806 = vld [vmem:[%s5 + $0x148] sm:$0xff]
        %v1807 = vld [vmem:[%s5 + $0x150] sm:$0xff]
        %v1808 = vld [vmem:[%s5 + $0x158] sm:$0xff]
        %v1809 = vld [vmem:[%s5 + $0x160] sm:$0xff]
        %v1810 = vld [vmem:[%s5 + $0x168] sm:$0xff]
        %v1811 = vld [vmem:[%s5 + $0x170] sm:$0xff]
        %v1812 = vld [vmem:[%s5 + $0x178] sm:$0xff]
        %v1813 = vld [vmem:[%s5 + $0x180] sm:$0xff]
        %v1814 = vld [vmem:[%s5 + $0x188] sm:$0xff]
        %v1815 = vld [vmem:[%s5 + $0x190] sm:$0xff]
        %v1816 = vld [vmem:[%s5 + $0x198] sm:$0xff]
        %v1817 = vld [vmem:[%s5 + $0x1a0] sm:$0xff]
        %v1818 = vld [vmem:[%s5 + $0x1a8] sm:$0xff]
        %v1819 = vld [vmem:[%s5 + $0x1b0] sm:$0xff]
        %v1820 = vld [vmem:[%s5 + $0x1b8] sm:$0xff]
        %v1821 = vld [vmem:[%s5 + $0x1c0] sm:$0xff]
        %v1822 = vld [vmem:[%s5 + $0x1c8] sm:$0xff]
        %v1823 = vld [vmem:[%s5 + $0x1d0] sm:$0xff]
        %v1824 = vld [vmem:[%s5 + $0x1d8] sm:$0xff]
        %v1825 = vld [vmem:[%s5 + $0x1e0] sm:$0xff]
        %v1826 = vld [vmem:[%s5 + $0x1e8] sm:$0xff]
        %v1827 = vld [vmem:[%s5 + $0x1f0] sm:$0xff]
        %v1828 = vld [vmem:[%s5 + $0x1f8] sm:$0xff]
        %v1829 = vld [vmem:[%s5 + $0x200] sm:$0xff]
        %v1830 = vld [vmem:[%s5 + $0x208] sm:$0xff]
        %v1831 = vld [vmem:[%s5 + $0x210] sm:$0xff]
        %v1832 = vld [vmem:[%s5 + $0x218] sm:$0xff]
        %v1833 = vld [vmem:[%s5 + $0x220] sm:$0xff]
        %v1834 = vld [vmem:[%s5 + $0x228] sm:$0xff]
        %v1835 = vld [vmem:[%s5 + $0x230] sm:$0xff]
        %v1836 = vld [vmem:[%s5 + $0x238] sm:$0xff]
        %v1837 = vld [vmem:[%s5 + $0x240] sm:$0xff]
        %v1838 = vld [vmem:[%s5 + $0x248] sm:$0xff]
        %v1839 = vld [vmem:[%s5 + $0x250] sm:$0xff]
        %v1840 = vld [vmem:[%s5 + $0x258] sm:$0xff]
        %v1841 = vld [vmem:[%s5 + $0x260] sm:$0xff]
        %v1842 = vld [vmem:[%s5 + $0x268] sm:$0xff]
        %v1843 = vld [vmem:[%s5 + $0x270] sm:$0xff]
        %v1844 = vld [vmem:[%s5 + $0x278] sm:$0xff]
        %v1845 = vld [vmem:[%s6] sm:$0x1]
        %v1847 = vlaneseq
        %v1848 = vshrl.u32 %v1847, 7
        %v1849 = vsub.s32 0, %v1848
        %v1850 = vrot.slane %v1764, %v1849
        %v1851 = vlaneseq
        %v1852 = vshrl.u32 %v1851, 7
        %v1853 = vsub.s32 1, %v1852
        %v1854 = vrot.slane %v1764, %v1853
        %v1855 = vlaneseq
        %v1856 = vshrl.u32 %v1855, 7
        %v1857 = vsub.s32 2, %v1856
        %v1858 = vrot.slane %v1764, %v1857
        %v1859 = vlaneseq
        %v1860 = vshrl.u32 %v1859, 7
        %v1861 = vsub.s32 3, %v1860
        %v1862 = vrot.slane %v1764, %v1861
        %v1863 = vlaneseq
        %v1864 = vshrl.u32 %v1863, 7
        %v1865 = vsub.s32 4, %v1864
        %v1866 = vrot.slane %v1764, %v1865
        %1872 = vmatprep.subr.mxu0 0.0
        %1873 = vmatpush1.msra.mxu0 %v1765
        %1874 = vmatprep.subr.mxu0 0.0
        %1875 = vmatpush1.msra.mxu0 %v1766
        %1876 = vmatprep.subr.mxu0 0.0
        %1877 = vmatpush1.msra.mxu0 %v1767
        %1878 = vmatprep.subr.mxu0 0.0
        %1879 = vmatpush1.msra.mxu0 %v1768
        %1880 = vmatprep.subr.mxu0 0.0
        %1881 = vmatpush1.msra.mxu0 %v1769
        %1882 = vmatprep.subr.mxu0 0.0
        %1883 = vmatpush1.msra.mxu0 %v1770
        %1884 = vmatprep.subr.mxu0 0.0
        %1885 = vmatpush1.msra.mxu0 %v1771
        %1886 = vmatprep.subr.mxu0 0.0
        %1887 = vmatpush1.msra.mxu0 %v1772
        %1888 = vmatprep.subr.mxu0 0.0
        %1889 = vmatpush1.msra.mxu0 %v1773
        %1890 = vmatprep.subr.mxu0 0.0
        %1891 = vmatpush1.msra.mxu0 %v1774
        %1892 = vmatprep.subr.mxu0 0.0
        %1893 = vmatpush1.msra.mxu0 %v1775
        %1894 = vmatprep.subr.mxu0 0.0
        %1895 = vmatpush1.msra.mxu0 %v1776
        %1896 = vmatprep.subr.mxu0 0.0
        %1897 = vmatpush1.msra.mxu0 %v1777
        %1898 = vmatprep.subr.mxu0 0.0
        %1899 = vmatpush1.msra.mxu0 %v1778
        %1900 = vmatprep.subr.mxu0 0.0
        %1901 = vmatpush1.msra.mxu0 %v1779
        %1902 = vmatprep.subr.mxu0 0.0
        %1903 = vmatpush1.msra.mxu0 %v1780
        %1904 = vmatprep.subr.mxu0 0.0
        %1905 = vmatpush1.msra.mxu0 %v1781
        %1906 = vmatprep.subr.mxu0 0.0
        %1907 = vmatpush1.msra.mxu0 %v1782
        %1908 = vmatprep.subr.mxu0 0.0
        %1909 = vmatpush1.msra.mxu0 %v1783
        %1910 = vmatprep.subr.mxu0 0.0
        %1911 = vmatpush1.msra.mxu0 %v1784
        %1912 = vmatprep.subr.mxu0 0.0
        %1913 = vmatpush1.msra.mxu0 %v1785
        %1914 = vmatprep.subr.mxu0 0.0
        %1915 = vmatpush1.msra.mxu0 %v1786
        %1916 = vmatprep.subr.mxu0 0.0
        %1917 = vmatpush1.msra.mxu0 %v1787
        %1918 = vmatprep.subr.mxu0 0.0
        %1919 = vmatpush1.msra.mxu0 %v1788
        %1920 = vmatprep.subr.mxu0 0.0
        %1921 = vmatpush1.msra.mxu0 %v1789
        %1922 = vmatprep.subr.mxu0 0.0
        %1923 = vmatpush1.msra.mxu0 %v1790
        %1924 = vmatprep.subr.mxu0 0.0
        %1925 = vmatpush1.msra.mxu0 %v1791
        %1926 = vmatprep.subr.mxu0 0.0
        %1927 = vmatpush1.msra.mxu0 %v1792
        %1928 = vmatprep.subr.mxu0 0.0
        %1929 = vmatpush1.msra.mxu0 %v1793
        %1930 = vmatprep.subr.mxu0 0.0
        %1931 = vmatpush1.msra.mxu0 %v1794
        %1932 = vmatprep.subr.mxu0 0.0
        %1933 = vmatpush1.msra.mxu0 %v1795
        %1934 = vmatprep.subr.mxu0 0.0
        %1935 = vmatpush1.msra.mxu0 %v1796
        %1936 = vmatprep.mubr.f32.mxu0 %v1854
        %1937 = vmatmul.mubr.f32.gmra.mrb[0].mxu0 %v1850
        %v1938 = vpop.f32.mrb[0].mxu0
        %v1939 = vadd.f32 %v1845, %v1938
        %v1940 = vpop.f32.mrb[0].mxu0
        %1941 = vdwg.mxu0
        %1942 = vmatprep.subr.mxu0 0.0
        %1943 = vmatpush1.msra.mxu0 %v1797
        %1944 = vmatprep.subr.mxu0 0.0
        %1945 = vmatpush1.msra.mxu0 %v1798
        %1946 = vmatprep.subr.mxu0 0.0
        %1947 = vmatpush1.msra.mxu0 %v1799
        %1948 = vmatprep.subr.mxu0 0.0
        %1949 = vmatpush1.msra.mxu0 %v1800
        %1950 = vmatprep.subr.mxu0 0.0
        %1951 = vmatpush1.msra.mxu0 %v1801
        %1952 = vmatprep.subr.mxu0 0.0
        %1953 = vmatpush1.msra.mxu0 %v1802
        %1954 = vmatprep.subr.mxu0 0.0
        %1955 = vmatpush1.msra.mxu0 %v1803
        %1956 = vmatprep.subr.mxu0 0.0
        %1957 = vmatpush1.msra.mxu0 %v1804
        %1958 = vmatprep.subr.mxu0 0.0
        %1959 = vmatpush1.msra.mxu0 %v1805
        %1960 = vmatprep.subr.mxu0 0.0
        %1961 = vmatpush1.msra.mxu0 %v1806
        %1962 = vmatprep.subr.mxu0 0.0
        %1963 = vmatpush1.msra.mxu0 %v1807
        %1964 = vmatprep.subr.mxu0 0.0
        %1965 = vmatpush1.msra.mxu0 %v1808
        %1966 = vmatprep.subr.mxu0 0.0
        %1967 = vmatpush1.msra.mxu0 %v1809
        %1968 = vmatprep.subr.mxu0 0.0
        %1969 = vmatpush1.msra.mxu0 %v1810
        %1970 = vmatprep.subr.mxu0 0.0
        %1971 = vmatpush1.msra.mxu0 %v1811
        %1972 = vmatprep.subr.mxu0 0.0
        %1973 = vmatpush1.msra.mxu0 %v1812
        %1974 = vmatprep.subr.mxu0 0.0
        %1975 = vmatpush1.msra.mxu0 %v1813
        %1976 = vmatprep.subr.mxu0 0.0
        %1977 = vmatpush1.msra.mxu0 %v1814
        %1978 = vmatprep.subr.mxu0 0.0
        %1979 = vmatpush1.msra.mxu0 %v1815
        %1980 = vmatprep.subr.mxu0 0.0
        %1981 = vmatpush1.msra.mxu0 %v1816
        %1982 = vmatprep.subr.mxu0 0.0
        %1983 = vmatpush1.msra.mxu0 %v1817
        %1984 = vmatprep.subr.mxu0 0.0
        %1985 = vmatpush1.msra.mxu0 %v1818
        %1986 = vmatprep.subr.mxu0 0.0
        %1987 = vmatpush1.msra.mxu0 %v1819
        %1988 = vmatprep.subr.mxu0 0.0
        %1989 = vmatpush1.msra.mxu0 %v1820
        %1990 = vmatprep.subr.mxu0 0.0
        %1991 = vmatpush1.msra.mxu0 %v1821
        %1992 = vmatprep.subr.mxu0 0.0
        %1993 = vmatpush1.msra.mxu0 %v1822
        %1994 = vmatprep.subr.mxu0 0.0
        %1995 = vmatpush1.msra.mxu0 %v1823
        %1996 = vmatprep.subr.mxu0 0.0
        %1997 = vmatpush1.msra.mxu0 %v1824
        %1998 = vmatprep.subr.mxu0 0.0
        %1999 = vmatpush1.msra.mxu0 %v1825
        %2000 = vmatprep.subr.mxu0 0.0
        %2001 = vmatpush1.msra.mxu0 %v1826
        %2002 = vmatprep.subr.mxu0 0.0
        %2003 = vmatpush1.msra.mxu0 %v1827
        %2004 = vmatprep.subr.mxu0 0.0
        %2005 = vmatpush1.msra.mxu0 %v1828
        %2006 = vmatprep.mubr.f32.mxu0 %v1862
        %2007 = vmatmul.mubr.f32.gmra.mrb[0].mxu0 %v1858
        %v2008 = vpop.f32.mrb[0].mxu0
        %v2009 = vadd.f32 %v1939, %v2008
        %v2010 = vpop.f32.mrb[0].mxu0
        %2011 = vdwg.mxu0
        %2012 = vmatprep.subr.mxu0 0.0
        %2013 = vmatpush1.msra.mxu0 %v1829
        %2014 = vmatprep.subr.mxu0 0.0
        %2015 = vmatpush1.msra.mxu0 %v1830
        %2016 = vmatprep.subr.mxu0 0.0
        %2017 = vmatpush1.msra.mxu0 %v1831
        %2018 = vmatprep.subr.mxu0 0.0
        %2019 = vmatpush1.msra.mxu0 %v1832
        %2020 = vmatprep.subr.mxu0 0.0
        %2021 = vmatpush1.msra.mxu0 %v1833
        %2022 = vmatprep.subr.mxu0 0.0
        %2023 = vmatpush1.msra.mxu0 %v1834
        %2024 = vmatprep.subr.mxu0 0.0
        %2025 = vmatpush1.msra.mxu0 %v1835
        %2026 = vmatprep.subr.mxu0 0.0
        %2027 = vmatpush1.msra.mxu0 %v1836
        %2028 = vmatprep.subr.mxu0 0.0
        %2029 = vmatpush1.msra.mxu0 %v1837
        %2030 = vmatprep.subr.mxu0 0.0
        %2031 = vmatpush1.msra.mxu0 %v1838
        %2032 = vmatprep.subr.mxu0 0.0
        %2033 = vmatpush1.msra.mxu0 %v1839
        %2034 = vmatprep.subr.mxu0 0.0
        %2035 = vmatpush1.msra.mxu0 %v1840
        %2036 = vmatprep.subr.mxu0 0.0
        %2037 = vmatpush1.msra.mxu0 %v1841
        %2038 = vmatprep.subr.mxu0 0.0
        %2039 = vmatpush1.msra.mxu0 %v1842
        %2040 = vmatprep.subr.mxu0 0.0
        %2041 = vmatpush1.msra.mxu0 %v1843
        %2042 = vmatprep.subr.mxu0 0.0
        %2043 = vmatpush1.msra.mxu0 %v1844
        %2044 = vmatprep.subr.mxu0 0.0
        %2045 = vmatpush1.msra.mxu0 0.0
        %2046 = vmatprep.subr.mxu0 0.0
        %2047 = vmatpush1.msra.mxu0 0.0
        %2048 = vmatprep.subr.mxu0 0.0
        %2049 = vmatpush1.msra.mxu0 0.0
        %2050 = vmatprep.subr.mxu0 0.0
        %2051 = vmatpush1.msra.mxu0 0.0
        %2052 = vmatprep.subr.mxu0 0.0
        %2053 = vmatpush1.msra.mxu0 0.0
        %2054 = vmatprep.subr.mxu0 0.0
        %2055 = vmatpush1.msra.mxu0 0.0
        %2056 = vmatprep.subr.mxu0 0.0
        %2057 = vmatpush1.msra.mxu0 0.0
        %2058 = vmatprep.subr.mxu0 0.0
        %2059 = vmatpush1.msra.mxu0 0.0
        %2060 = vmatprep.subr.mxu0 0.0
        %2061 = vmatpush1.msra.mxu0 0.0
        %2062 = vmatprep.subr.mxu0 0.0
        %2063 = vmatpush1.msra.mxu0 0.0
        %2064 = vmatprep.subr.mxu0 0.0
        %2065 = vmatpush1.msra.mxu0 0.0
        %2066 = vmatprep.subr.mxu0 0.0
        %2067 = vmatpush1.msra.mxu0 0.0
        %2068 = vmatprep.subr.mxu0 0.0
        %2069 = vmatpush1.msra.mxu0 0.0
        %2070 = vmatprep.subr.mxu0 0.0
        %2071 = vmatpush1.msra.mxu0 0.0
        %2072 = vmatprep.subr.mxu0 0.0
        %2073 = vmatpush1.msra.mxu0 0.0
        %2074 = vmatprep.subr.mxu0 0.0
        %2075 = vmatpush1.msra.mxu0 0.0
        %2076 = vmatprep.mubr.f32.mxu0 0.0
        %2077 = vmatmul.mubr.f32.gmra.mrb[0].mxu0 %v1866
        %v2078 = vpop.f32.mrb[0].mxu0
        %v2079 = vadd.f32 %v2009, %v2078
        %v2080 = vpop.f32.mrb[0].mxu0
        %2081 = vdwg.mxu0
        %v2082 = vmax.f32 %v2079, 0.0
        %v2083 = vld [vmem:[%s7] sm:$0xff]
        %v2084 = vld [vmem:[%s7 + $0x8] sm:$0xff]
        %v2085 = vld [vmem:[%s7 + $0x10] sm:$0xff]
        %v2086 = vld [vmem:[%s7 + $0x18] sm:$0xff]
        %v2087 = vld [vmem:[%s7 + $0x20] sm:$0xff]
        %v2088 = vld [vmem:[%s7 + $0x28] sm:$0xff]
        %v2089 = vld [vmem:[%s7 + $0x30] sm:$0xff]
        %v2090 = vld [vmem:[%s7 + $0x38] sm:$0xff]
        %v2091 = vld [vmem:[%s7 + $0x40] sm:$0xff]
        %v2092 = vld [vmem:[%s7 + $0x48] sm:$0xff]
        %v2093 = vld [vmem:[%s7 + $0x50] sm:$0xff]
        %v2094 = vld [vmem:[%s7 + $0x58] sm:$0xff]
        %v2095 = vld [vmem:[%s7 + $0x60] sm:$0xff]
        %v2096 = vld [vmem:[%s7 + $0x68] sm:$0xff]
        %v2097 = vld [vmem:[%s7 + $0x70] sm:$0xff]
        %v2098 = vld [vmem:[%s8] sm:$0x1]
        %vm2099 = vcmask 982016
        %v2101 = vsel %vm2099, %v2082, 0
        %2103 = vmatprep.subr.mxu0 0.0
        %2104 = vmatpush1.msra.mxu0 %v2083
        %2105 = vmatprep.subr.mxu0 0.0
        %2106 = vmatpush1.msra.mxu0 %v2084
        %2107 = vmatprep.subr.mxu0 0.0
        %2108 = vmatpush1.msra.mxu0 %v2085
        %2109 = vmatprep.subr.mxu0 0.0
        %2110 = vmatpush1.msra.mxu0 %v2086
        %2111 = vmatprep.subr.mxu0 0.0
        %2112 = vmatpush1.msra.mxu0 %v2087
        %2113 = vmatprep.subr.mxu0 0.0
        %2114 = vmatpush1.msra.mxu0 %v2088
        %2115 = vmatprep.subr.mxu0 0.0
        %2116 = vmatpush1.msra.mxu0 %v2089
        %2117 = vmatprep.subr.mxu0 0.0
        %2118 = vmatpush1.msra.mxu0 %v2090
        %2119 = vmatprep.subr.mxu0 0.0
        %2120 = vmatpush1.msra.mxu0 %v2091
        %2121 = vmatprep.subr.mxu0 0.0
        %2122 = vmatpush1.msra.mxu0 %v2092
        %2123 = vmatprep.subr.mxu0 0.0
        %2124 = vmatpush1.msra.mxu0 %v2093
        %2125 = vmatprep.subr.mxu0 0.0
        %2126 = vmatpush1.msra.mxu0 %v2094
        %2127 = vmatprep.subr.mxu0 0.0
        %2128 = vmatpush1.msra.mxu0 %v2095
        %2129 = vmatprep.subr.mxu0 0.0
        %2130 = vmatpush1.msra.mxu0 %v2096
        %2131 = vmatprep.subr.mxu0 0.0
        %2132 = vmatpush1.msra.mxu0 %v2097
        %2133 = vmatprep.subr.mxu0 0.0
        %2134 = vmatpush1.msra.mxu0 0.0
        %2135 = vmatprep.subr.mxu0 0.0
        %2136 = vmatpush1.msra.mxu0 0.0
        %2137 = vmatprep.subr.mxu0 0.0
        %2138 = vmatpush1.msra.mxu0 0.0
        %2139 = vmatprep.subr.mxu0 0.0
        %2140 = vmatpush1.msra.mxu0 0.0
        %2141 = vmatprep.subr.mxu0 0.0
        %2142 = vmatpush1.msra.mxu0 0.0
        %2143 = vmatprep.subr.mxu0 0.0
        %2144 = vmatpush1.msra.mxu0 0.0
        %2145 = vmatprep.subr.mxu0 0.0
        %2146 = vmatpush1.msra.mxu0 0.0
        %2147 = vmatprep.subr.mxu0 0.0
        %2148 = vmatpush1.msra.mxu0 0.0
        %2149 = vmatprep.subr.mxu0 0.0
        %2150 = vmatpush1.msra.mxu0 0.0
        %2151 = vmatprep.subr.mxu0 0.0
        %2152 = vmatpush1.msra.mxu0 0.0
        %2153 = vmatprep.subr.mxu0 0.0
        %2154 = vmatpush1.msra.mxu0 0.0
        %2155 = vmatprep.subr.mxu0 0.0
        %2156 = vmatpush1.msra.mxu0 0.0
        %2157 = vmatprep.subr.mxu0 0.0
        %2158 = vmatpush1.msra.mxu0 0.0
        %2159 = vmatprep.subr.mxu0 0.0
        %2160 = vmatpush1.msra.mxu0 0.0
        %2161 = vmatprep.subr.mxu0 0.0
        %2162 = vmatpush1.msra.mxu0 0.0
        %2163 = vmatprep.subr.mxu0 0.0
        %2164 = vmatpush1.msra.mxu0 0.0
        %2165 = vmatprep.subr.mxu0 0.0
        %2166 = vmatpush1.msra.mxu0 0.0
        %2167 = vmatprep.mubr.f32.mxu0 0.0
        %2168 = vmatmul.mubr.f32.gmra.mrb[0].mxu0 %v2101
        %v2169 = vpop.f32.mrb[0].mxu0
        %v2170 = vadd.f32 %v2098, %v2169
        %v2171 = vpop.f32.mrb[0].mxu0
        %2172 = vdwg.mxu0
        %v2173 = vmax.f32 %v2170, 0.0
        %v2174 = vld [vmem:[%s9] sm:$0xff]
        %v2175 = vld [vmem:[%s9 + $0x8] sm:$0xff]
        %v2176 = vld [vmem:[%s9 + $0x10] sm:$0xff]
        %v2177 = vld [vmem:[%s9 + $0x18] sm:$0xff]
        %v2178 = vld [vmem:[%s9 + $0x20] sm:$0xff]
        %v2179 = vld [vmem:[%s9 + $0x28] sm:$0xff]
        %v2180 = vld [vmem:[%s9 + $0x30] sm:$0xff]
        %v2181 = vld [vmem:[%s9 + $0x38] sm:$0xff]
        %v2182 = vld [vmem:[%s9 + $0x40] sm:$0xff]
        %v2183 = vld [vmem:[%s9 + $0x48] sm:$0xff]
        %v2184 = vld [vmem:[%s9 + $0x50] sm:$0xf]
        %v2185 = vld [vmem:[%s10] sm:$0x1]
        %vm2186 = vcmask 687104
        %v2188 = vsel %vm2186, %v2173, 0
        %v2191 = vsel %vm1605, %v2184, 0
        %2193 = vmatprep.subr.mxu0 0.0
        %2194 = vmatpush1.msra.mxu0 %v2174
        %2195 = vmatprep.subr.mxu0 0.0
        %2196 = vmatpush1.msra.mxu0 %v2175
        %2197 = vmatprep.subr.mxu0 0.0
        %2198 = vmatpush1.msra.mxu0 %v2176
        %2199 = vmatprep.subr.mxu0 0.0
        %2200 = vmatpush1.msra.mxu0 %v2177
        %2201 = vmatprep.subr.mxu0 0.0
        %2202 = vmatpush1.msra.mxu0 %v2178
        %2203 = vmatprep.subr.mxu0 0.0
        %2204 = vmatpush1.msra.mxu0 %v2179
        %2205 = vmatprep.subr.mxu0 0.0
        %2206 = vmatpush1.msra.mxu0 %v2180
        %2207 = vmatprep.subr.mxu0 0.0
        %2208 = vmatpush1.msra.mxu0 %v2181
        %2209 = vmatprep.subr.mxu0 0.0
        %2210 = vmatpush1.msra.mxu0 %v2182
        %2211 = vmatprep.subr.mxu0 0.0
        %2212 = vmatpush1.msra.mxu0 %v2183
        %2213 = vmatprep.subr.mxu0 0.0
        %2214 = vmatpush1.msra.mxu0 %v2191
        %2215 = vmatprep.subr.mxu0 0.0
        %2216 = vmatpush1.msra.mxu0 0.0
        %2217 = vmatprep.subr.mxu0 0.0
        %2218 = vmatpush1.msra.mxu0 0.0
        %2219 = vmatprep.subr.mxu0 0.0
        %2220 = vmatpush1.msra.mxu0 0.0
        %2221 = vmatprep.subr.mxu0 0.0
        %2222 = vmatpush1.msra.mxu0 0.0
        %2223 = vmatprep.subr.mxu0 0.0
        %2224 = vmatpush1.msra.mxu0 0.0
        %2225 = vmatprep.subr.mxu0 0.0
        %2226 = vmatpush1.msra.mxu0 0.0
        %2227 = vmatprep.subr.mxu0 0.0
        %2228 = vmatpush1.msra.mxu0 0.0
        %2229 = vmatprep.subr.mxu0 0.0
        %2230 = vmatpush1.msra.mxu0 0.0
        %2231 = vmatprep.subr.mxu0 0.0
        %2232 = vmatpush1.msra.mxu0 0.0
        %2233 = vmatprep.subr.mxu0 0.0
        %2234 = vmatpush1.msra.mxu0 0.0
        %2235 = vmatprep.subr.mxu0 0.0
        %2236 = vmatpush1.msra.mxu0 0.0
        %2237 = vmatprep.subr.mxu0 0.0
        %2238 = vmatpush1.msra.mxu0 0.0
        %2239 = vmatprep.subr.mxu0 0.0
        %2240 = vmatpush1.msra.mxu0 0.0
        %2241 = vmatprep.subr.mxu0 0.0
        %2242 = vmatpush1.msra.mxu0 0.0
        %2243 = vmatprep.subr.mxu0 0.0
        %2244 = vmatpush1.msra.mxu0 0.0
        %2245 = vmatprep.subr.mxu0 0.0
        %2246 = vmatpush1.msra.mxu0 0.0
        %2247 = vmatprep.subr.mxu0 0.0
        %2248 = vmatpush1.msra.mxu0 0.0
        %2249 = vmatprep.subr.mxu0 0.0
        %2250 = vmatpush1.msra.mxu0 0.0
        %2251 = vmatprep.subr.mxu0 0.0
        %2252 = vmatpush1.msra.mxu0 0.0
        %2253 = vmatprep.subr.mxu0 0.0
        %2254 = vmatpush1.msra.mxu0 0.0
        %2255 = vmatprep.subr.mxu0 0.0
        %2256 = vmatpush1.msra.mxu0 0.0
        %2257 = vmatprep.mubr.f32.mxu0 0.0
        %2258 = vmatmul.mubr.f32.gmra.mrb[0].mxu0 %v2188
        %v2259 = vpop.f32.mrb[0].mxu0
        %v2260 = vadd.f32 %v2185, %v2259
        %v2261 = vpop.f32.mrb[0].mxu0
        %2262 = vdwg.mxu0
        %vm2263 = vcmask 73728
        %2264 = vst.msk [vmem:[%s393] sm:$0x1] %vm2263, %v2260
        %s2265 = sand.u32 %s270, 1
        %s2266 = scalar_lea.sflag [#allocation7], %s2265
        %s2267 = sand.u32 %s270, 1
        %s2268 = scalar_lea.vmem [#allocation8], %s2267
        // Predicated region
        $region69: #{net_forward.1} parent=63 // pred_check
          %p2269 = pneg %p280
        $region70: #{net_forward.1} parent=63 // pred_check_branch
          %2271 = sbr.rel (%p2269) target = $region72
        $region71: #{net_forward.1} parent=63 // pred_region
          %s2273 = ssub.s32 16, 16
          %2274 = vsyncadd %s2266, %s2273
          %s2275 = smul.addr %s26, 16
          %s2276 = scalar_lea.hbm %s11, %s2275
          %s2278 = sshll.u32 %s2268, 4
          %s2279 = int_to_ptr.vmem [resolvable:$true] %s2278
          %2281 = dma.vmem_to_hbm [thread:$0]  %s2279, 16, %s2276, %s2266
        $region72: #{net_forward.1} parent=63 // pred_fallthru
          _
      $region64: #{net_forward.1} parent=5 // pred_fallthru
        _
      %p2282 = scmp.le.s32.totalorder 2, %s21
      // Predicated region
      $region73: #{net_forward.1} parent=5 // pred_check
        %p2283 = pneg %p2282
      $region74: #{net_forward.1} parent=5 // pred_check_branch
        %2285 = sbr.rel (%p2283) target = $region76
      $region75: #{net_forward.1} parent=5 // pred_region
        %s2286 = ssub.s32 %s21, 2
        // Predicated region
        $region77: #{net_forward.1} parent=75 // pred_check
          %p2287 = pneg %p286
        $region78: #{net_forward.1} parent=75 // pred_check_branch
          %2289 = sbr.rel (%p2287) target = $region80
        $region79: #{net_forward.1} parent=75 // pred_region
          %s2290 = sand.u32 %s271, 1
          %s2291 = scalar_lea.sflag [#allocation7], %s2290
          %s2292 = sand.u32 %s271, 1
          %s2293 = scalar_lea.vmem [#allocation8], %s2292
          %2294 = dma.done %s2291, 16
        $region80: #{net_forward.1} parent=75 // pred_fallthru
          _
      $region76: #{net_forward.1} parent=5 // pred_fallthru
        _
    $region6: #{net_forward.1} parent=1 // loop_footer
      %s25 = sadd.s32 1, %s21
    $region7: #{net_forward.1} parent=1 // loop_footer_branch
      %20 = sbr.rel target = $region3
    $region8: #{net_forward.1} parent=1 // loop_exit
      _
    %2295 = vsyncpa [#allocation6], 1
    %s2296 = scalar_lea.sflag [#allocation6], 1
    %2297 = vsyncpa %s2296, 1
    %2298 = vsyncpa [#allocation7], 1
    %s2299 = scalar_lea.sflag [#allocation7], 1
    %2300 = vsyncpa %s2299, 1

</llo_original>
